<compile_context>
chip_gen: v7x
topology: tpu7x:2x2x1
jax: 0.10.0
libtpu: 0.0.40
codegen_flags: <defaults>
</compile_context>

<pallas_src>
import functools

import jax
import jax.numpy as jnp
from jax import lax
from jax.experimental import pallas as pl
from jax.experimental.pallas import tpu as pltpu


# ----------------------------------------------------------------------------
# math helpers (kernel-side)
# ----------------------------------------------------------------------------
def _erf_approx(x):
    # Abramowitz & Stegun 7.1.26, |err| < 1.5e-7.  exp + approx recip -> EUP slot.
    p = jnp.float32(0.3275911)
    a1 = jnp.float32(0.254829592)
    a2 = jnp.float32(-0.284496736)
    a3 = jnp.float32(1.421413741)
    a4 = jnp.float32(-1.453152027)
    a5 = jnp.float32(1.061405429)
    ax = jnp.abs(x)
    t = pl.reciprocal(jnp.float32(1.0) + p * ax, approx=True)
    poly = ((((a5 * t + a4) * t + a3) * t + a2) * t + a1) * t
    y = jnp.float32(1.0) - poly * jnp.exp(-ax * ax)
    return jnp.where(x >= 0, y, -y)


def _gelu_erf(x):
    # matches PyTorch nn.GELU default (erf-based)
    return jnp.float32(0.5) * x * (jnp.float32(1.0) +
                                   _erf_approx(x * jnp.float32(0.7071067811865476)))


# ----------------------------------------------------------------------------
# Phase 1: SwitchGate — masked top-1 gate scores + global per-expert denominator
# ----------------------------------------------------------------------------
def switch_gate_kernel(x_ref, wg_ref, bg_ref, masked_ref, denom_ref):
    t = pl.program_id(0)

    x = x_ref[...].astype(jnp.float32)                               # (TM, D)
    logits = jnp.dot(x, wg_ref[...].astype(jnp.float32),
                     preferred_element_type=jnp.float32) + bg_ref[...]
    logits = logits - jnp.max(logits, axis=-1, keepdims=True)
    ex = jnp.exp(logits)
    gate = ex * pl.reciprocal(jnp.sum(ex, axis=-1, keepdims=True), approx=True)

    # top-1 mask, first occurrence on ties (matches torch.topk / scatter_)
    n_e = gate.shape[-1]
    eidx = lax.broadcasted_iota(jnp.int32, gate.shape, 1)
    mx = jnp.max(gate, axis=-1, keepdims=True)
    first = jnp.min(jnp.where(gate == mx, eidx, n_e), axis=-1, keepdims=True)
    masked = jnp.where(eidx == first, gate, jnp.float32(0.0))        # (TM, E)
    masked_ref[...] = masked

    # Global per-expert denominator, accumulated in the resident (1, E) output
    # block.  NOTE: only correct because this grid axis is "arbitrary" (one core).
    @pl.when(t == 0)
    def _():
        denom_ref[...] = jnp.zeros_like(denom_ref)

    denom_ref[...] += jnp.sum(masked, axis=0, keepdims=True)


# ----------------------------------------------------------------------------
# Phase 2: per-expert FeedForward + weighted combine (grid = tokens x experts)
# ----------------------------------------------------------------------------
def expert_ffn_kernel(occ_ref, gate_ref, x_ref, w1_ref, b1_ref, w2_ref, b2_ref,
                      out_ref, acc_ref, *, weights_resident, num_experts):
    t = pl.program_id(0)
    e = pl.program_id(1)

    @pl.when(e == 0)
    def _():
        acc_ref[...] = jnp.zeros_like(acc_ref)

    # Skip the whole expert FFN for (tile, expert) pairs with zero routed tokens.
    @pl.when(occ_ref[t * num_experts + e] > 0)
    def _():
        if weights_resident:
            w1 = w1_ref[e]          # (D, H)  bf16, VMEM-resident full stack
            b1 = b1_ref[e]          # (1, H)  f32
            w2 = w2_ref[e]          # (H, D)  bf16
            b2 = b2_ref[e]          # (1, D)  f32
        else:
            w1 = w1_ref[0]
            b1 = b1_ref[0]
            w2 = w2_ref[0]
            b2 = b2_ref[0]

        x = x_ref[...]                                               # (TM, D) bf16
        h = jnp.dot(x, w1, preferred_element_type=jnp.float32) + b1  # (TM, H) f32
        h = _gelu_erf(h)
        y = jnp.dot(h.astype(x.dtype), w2,
                    preferred_element_type=jnp.float32) + b2         # (TM, D) f32

        # gate weight arrives as a ready (TM, 1) column: masked * capacity/(denom+eps)
        acc_ref[...] += gate_ref[0] * y

    @pl.when(e == pl.num_programs(1) - 1)
    def _():
        out_ref[...] = acc_ref[...].astype(out_ref.dtype)


# ----------------------------------------------------------------------------
# wrapper
# ----------------------------------------------------------------------------
def switch_moe(x, wg, bg, w1, b1, w2, b2, *, capacity_factor=1.0, epsilon=1e-6,
               token_tile=256, compute_dtype=jnp.bfloat16):
    n_tokens, dim = x.shape
    num_experts = wg.shape[1]
    hidden = w1.shape[-1]
    capacity = int(capacity_factor * n_tokens)

    tm = min(token_tile, n_tokens)
    while tm > 8 and n_tokens % tm:
        tm //= 2
    assert tm >= 8 and n_tokens % tm == 0, "n_tokens must tile into >=8-row blocks"
    num_tiles = n_tokens // tm

    # ---------------- phase 1: gating (masked scores + global denominator) -----
    masked, denom = pl.pallas_call(
        switch_gate_kernel,
        out_shape=(jax.ShapeDtypeStruct((n_tokens, num_experts), jnp.float32),
                   jax.ShapeDtypeStruct((1, num_experts), jnp.float32)),
        grid=(num_tiles,),
        in_specs=[
            pl.BlockSpec((tm, dim), lambda t: (t, 0)),
            pl.BlockSpec((dim, num_experts), lambda t: (0, 0)),
            pl.BlockSpec((1, num_experts), lambda t: (0, 0)),
        ],
        out_specs=(pl.BlockSpec((tm, num_experts), lambda t: (t, 0)),
                   pl.BlockSpec((1, num_experts), lambda t: (0, 0))),
        compiler_params=pltpu.CompilerParams(dimension_semantics=("arbitrary",)),
    )(x, wg, bg)

    # ---------------- wrapper-side fusion (tiny XLA ops) -----------------------
    gate_scale = jnp.float32(capacity) / (denom + jnp.float32(epsilon))   # (1, E)
    combined = masked * gate_scale                                        # (N, E)
    gate_cols = jnp.transpose(combined)[:, :, None]                       # (E, N, 1)
    # per-(tile, expert) occupancy for the sparsity skip (int32 -> SMEM prefetch)
    occ = jnp.sum((masked > 0).astype(jnp.int32)
                  .reshape(num_tiles, tm, num_experts), axis=1).reshape(-1)

    x_c = x.astype(compute_dtype)             # halves x DMA bytes / VMEM footprint
    w1_c = w1.astype(compute_dtype)
    w2_c = w2.astype(compute_dtype)
    b1_f = b1.astype(jnp.float32)
    b2_f = b2.astype(jnp.float32)

    # ---------------- VMEM budgeting (per-generation, not a hard 64 MiB cap) ---
    itemsize = jnp.dtype(compute_dtype).itemsize
    try:
        info = pltpu.get_tpu_info()
        vmem_cap = int(getattr(info, "vmem_capacity_bytes", 64 << 20))
    except Exception:  # pragma: no cover - conservative fallback
        vmem_cap = 64 << 20
    budget = int(0.75 * vmem_cap)

    weight_bytes = (num_experts * 2 * dim * hidden * itemsize
                    + num_experts * (hidden + dim) * 4)
    # conservative: assume the pipeline may keep 2 copies even of invariant blocks
    weights_resident = (2 * weight_bytes) <= int(0.6 * budget)

    act_bytes = (2 * tm * dim * itemsize       # x tiles (double-buffered, bf16)
                 + 2 * tm * 128 * 4            # gate columns (lane-padded)
                 + 2 * tm * dim * 4            # output tiles (double-buffered)
                 + tm * dim * 4                # f32 accumulator scratch
                 + tm * hidden * 4             # h intermediate
                 + tm * dim * 4)               # y intermediate
    if weights_resident:
        vmem_est = 2 * weight_bytes + act_bytes
    else:
        per_exp = 2 * dim * hidden * itemsize + (hidden + dim) * 4
        vmem_est = 2 * per_exp + act_bytes
    vmem_limit = max(min(budget, int(1.3 * vmem_est) + (4 << 20)), 16 << 20)

    # ---------------- phase 2: experts + weighted combine ----------------------
    if weights_resident:
        w_specs = [
            pl.BlockSpec((num_experts, dim, hidden), lambda t, e, o: (0, 0, 0)),
            pl.BlockSpec((num_experts, 1, hidden), lambda t, e, o: (0, 0, 0)),
            pl.BlockSpec((num_experts, hidden, dim), lambda t, e, o: (0, 0, 0)),
            pl.BlockSpec((num_experts, 1, dim), lambda t, e, o: (0, 0, 0)),
        ]
    else:
        # TODO(synk): experts-outer grid + hidden-dim tiling for very large experts.
        w_specs = [
            pl.BlockSpec((1, dim, hidden), lambda t, e, o: (e, 0, 0)),
            pl.BlockSpec((1, 1, hidden), lambda t, e, o: (e, 0, 0)),
            pl.BlockSpec((1, hidden, dim), lambda t, e, o: (e, 0, 0)),
            pl.BlockSpec((1, 1, dim), lambda t, e, o: (e, 0, 0)),
        ]

    grid_spec = pltpu.PrefetchScalarGridSpec(
        num_scalar_prefetch=1,
        grid=(num_tiles, num_experts),
        in_specs=[
            pl.BlockSpec((1, tm, 1), lambda t, e, o: (e, t, 0)),   # gate column
            pl.BlockSpec((tm, dim), lambda t, e, o: (t, 0)),       # x (bf16)
        ] + w_specs,
        out_specs=pl.BlockSpec((tm, dim), lambda t, e, o: (t, 0)),
        scratch_shapes=[pltpu.VMEM((tm, dim), jnp.float32)],
    )

    flops = 2 * n_tokens * num_experts * (dim * hidden + hidden * dim)
    transcendentals = n_tokens * num_experts * hidden
    bytes_accessed = (n_tokens * dim * (itemsize + 4)
                      + num_experts * 2 * dim * hidden * itemsize
                      + num_experts * (hidden + dim) * 4
                      + num_experts * n_tokens * 4)

    out = pl.pallas_call(
        functools.partial(expert_ffn_kernel,
                          weights_resident=weights_resident,
                          num_experts=num_experts),
        out_shape=jax.ShapeDtypeStruct((n_tokens, dim), jnp.float32),
        grid_spec=grid_spec,
        compiler_params=pltpu.CompilerParams(
            dimension_semantics=("parallel", "arbitrary"),
            vmem_limit_bytes=vmem_limit),
        cost_estimate=pl.CostEstimate(flops=flops,
                                      transcendentals=transcendentals,
                                      bytes_accessed=bytes_accessed),
    )(occ, gate_cols, x_c, w1_c, b1_f, w2_c, b2_f)
    return out


# ----------------------------------------------------------------------------
# plain-JAX reference mirroring the PyTorch forward (f32, exact erf GELU)
# ----------------------------------------------------------------------------
def switch_moe_reference(x, wg, bg, w1, b1, w2, b2, *, capacity_factor=1.0,
                         epsilon=1e-6):
    n_tokens = x.shape[0]
    num_experts = wg.shape[1]
    capacity = int(capacity_factor * n_tokens)
    gate = jax.nn.softmax(x @ wg + bg[0], axis=-1)
    top1 = jnp.argmax(gate, axis=-1)
    mask = jax.nn.one_hot(top1, num_experts, dtype=gate.dtype)
    masked = gate * mask
    denom = masked.sum(0, keepdims=True) + epsilon
    gate_final = masked / denom * capacity
    outs = []
    for e in range(num_experts):
        h = x @ w1[e] + b1[e, 0]
        h = 0.5 * h * (1.0 + jax.scipy.special.erf(h / jnp.sqrt(2.0).astype(h.dtype)))
        outs.append(h @ w2[e] + b2[e, 0])
    stacked = jnp.stack(outs, axis=-1)                   # (N, D, E)
    return jnp.sum(gate_final[:, None, :] * stacked, axis=-1)


if __name__ == "__main__":
    # small but MXU-friendly shapes (128-aligned D/H)
    N, DIM, NUM_EXPERTS, MULT = 256, 128, 4, 4
    HIDDEN = DIM * MULT

    key = jax.random.PRNGKey(0)
    ks = jax.random.split(key, 7)
    scale = 0.05
    x = jax.random.normal(ks[0], (N, DIM), jnp.float32)
    wg = jax.random.normal(ks[1], (DIM, NUM_EXPERTS), jnp.float32) * scale
    bg = jax.random.normal(ks[2], (1, NUM_EXPERTS), jnp.float32) * scale
    w1 = jax.random.normal(ks[3], (NUM_EXPERTS, DIM, HIDDEN), jnp.float32) * scale
    b1 = jax.random.normal(ks[4], (NUM_EXPERTS, 1, HIDDEN), jnp.float32) * scale
    w2 = jax.random.normal(ks[5], (NUM_EXPERTS, HIDDEN, DIM), jnp.float32) * scale
    b2 = jax.random.normal(ks[6], (NUM_EXPERTS, 1, DIM), jnp.float32) * scale

    out = switch_moe(x, wg, bg, w1, b1, w2, b2, capacity_factor=1.0)
    out = jax.block_until_ready(out)

    ref = switch_moe_reference(x, wg, bg, w1, b1, w2, b2, capacity_factor=1.0)
    assert out.shape == (N, DIM)
    # kernel uses bf16 MXU inputs (f32 accumulation) + approx EUP recips
    rel_err = float(jnp.max(jnp.abs(out - ref) / (1.0 + jnp.abs(ref))))
    assert rel_err < 3e-2, f"mismatch vs reference: max scaled err {rel_err}"
    print("KERNEL_OK")
</pallas_src>

<mosaic_0001>
module attributes {stable_mosaic.version = 11 : i64} {
  func.func @switch_gate_kernel(%arg0: i32, %arg1: memref<256x128xf32, #tpu.memory_space<vmem>>, %arg2: memref<128x4xf32, #tpu.memory_space<vmem>>, %arg3: memref<1x4xf32, #tpu.memory_space<vmem>>, %arg4: memref<256x4xf32, #tpu.memory_space<vmem>>, %arg5: memref<1x4xf32, #tpu.memory_space<vmem>>) attributes {dimension_semantics = [#tpu.dimension_semantics<arbitrary>], iteration_bounds = array<i64: 1>, scalar_prefetch = 0 : i64, scratch_operands = 0 : i64, tpu.core_type = #tpu.core_type<tc>, window_params = [{transform_indices = @transform_0, window_bounds = array<i64: 256, 128>}, {pipeline_mode = #tpu.pipeline_mode<synchronous>, transform_indices = @transform_1, window_bounds = array<i64: 128, 4>}, {pipeline_mode = #tpu.pipeline_mode<synchronous>, transform_indices = @transform_2, window_bounds = array<i64: 1, 4>}, {transform_indices = @transform_3, window_bounds = array<i64: 256, 4>}, {pipeline_mode = #tpu.pipeline_mode<synchronous>, transform_indices = @transform_4, window_bounds = array<i64: 1, 4>}]} {
    %c0 = arith.constant 0 : index
    %c0_0 = arith.constant 0 : index
    %0 = vector.load %arg1[%c0, %c0_0] : memref<256x128xf32, #tpu.memory_space<vmem>>, vector<256x128xf32>
    %c0_1 = arith.constant 0 : index
    %c0_2 = arith.constant 0 : index
    %1 = vector.load %arg2[%c0_1, %c0_2] : memref<128x4xf32, #tpu.memory_space<vmem>>, vector<128x4xf32>
    %cst = arith.constant dense<0.000000e+00> : vector<256x4xf32>
    %2 = tpu.matmul %0, %1, %cst {dimension_numbers = #tpu.dot_dimension_numbers<[1], [0], [0], [1], [0, 0, 1, 1], [], []>} : vector<256x128xf32>, vector<128x4xf32>, vector<256x4xf32> -> vector<256x4xf32>
    %c0_3 = arith.constant 0 : index
    %c0_4 = arith.constant 0 : index
    %3 = vector.load %arg3[%c0_3, %c0_4] : memref<1x4xf32, #tpu.memory_space<vmem>>, vector<1x4xf32>
    %4 = vector.broadcast %3 : vector<1x4xf32> to vector<256x4xf32>
    %5 = arith.addf %2, %4 : vector<256x4xf32>
    %cst_5 = arith.constant dense<0xFF800000> : vector<256xf32>
    %6 = vector.multi_reduction <maximumf>, %5, %cst_5 [1] : vector<256x4xf32> to vector<256xf32>
    %7 = vector.shape_cast %6 : vector<256xf32> to vector<256x1xf32>
    %8 = vector.broadcast %7 : vector<256x1xf32> to vector<256x4xf32>
    %9 = arith.subf %5, %8 : vector<256x4xf32>
    %10 = math.exp %9 : vector<256x4xf32>
    %cst_6 = arith.constant dense<0.000000e+00> : vector<256xf32>
    %11 = vector.multi_reduction <add>, %10, %cst_6 [1] : vector<256x4xf32> to vector<256xf32>
    %12 = vector.shape_cast %11 : vector<256xf32> to vector<256x1xf32>
    %13 = tpu.reciprocal %12 {approx = true} : vector<256x1xf32> -> vector<256x1xf32>
    %14 = vector.broadcast %13 : vector<256x1xf32> to vector<256x4xf32>
    %15 = arith.mulf %10, %14 : vector<256x4xf32>
    %16 = tpu.iota {dimensions = array<i32: 1>} : vector<256x4xi32>
    %cst_7 = arith.constant dense<0xFF800000> : vector<256xf32>
    %17 = vector.multi_reduction <maximumf>, %15, %cst_7 [1] : vector<256x4xf32> to vector<256xf32>
    %18 = vector.shape_cast %17 : vector<256xf32> to vector<256x1xf32>
    %19 = vector.broadcast %18 : vector<256x1xf32> to vector<256x4xf32>
    %20 = arith.cmpf oeq, %15, %19 : vector<256x4xf32>
    %c4_i32 = arith.constant 4 : i32
    %21 = vector.broadcast %c4_i32 : i32 to vector<256x4xi32>
    %22 = arith.select %20, %16, %21 : vector<256x4xi1>, vector<256x4xi32>
    %cst_8 = arith.constant dense<2147483647> : vector<256xi32>
    %23 = vector.multi_reduction <minsi>, %22, %cst_8 [1] : vector<256x4xi32> to vector<256xi32>
    %24 = vector.shape_cast %23 : vector<256xi32> to vector<256x1xi32>
    %25 = vector.broadcast %24 : vector<256x1xi32> to vector<256x4xi32>
    %26 = arith.cmpi eq, %16, %25 : vector<256x4xi32>
    %cst_9 = arith.constant 0.000000e+00 : f32
    %27 = vector.broadcast %cst_9 : f32 to vector<256x4xf32>
    %28 = arith.select %26, %15, %27 : vector<256x4xi1>, vector<256x4xf32>
    %c0_10 = arith.constant 0 : index
    %c0_11 = arith.constant 0 : index
    %29 = vector.load %arg4[%c0_10, %c0_11] : memref<256x4xf32, #tpu.memory_space<vmem>>, vector<256x4xf32>
    tpu.vector_store %arg4[%c0_10, %c0_11], %28 {strides = array<i32>} : memref<256x4xf32, #tpu.memory_space<vmem>>, vector<256x4xf32>,
    %c0_i32 = arith.constant 0 : i32
    %30 = arith.cmpi eq, %arg0, %c0_i32 : i32
    %31 = arith.extui %30 : i1 to i32
    %c0_i32_12 = arith.constant 0 : i32
    %32 = arith.cmpi ne, %31, %c0_i32_12 : i32
    scf.if %32 {
      %cst_18 = arith.constant 0.000000e+00 : f32
      %38 = vector.broadcast %cst_18 : f32 to vector<1x4xf32>
      %c0_19 = arith.constant 0 : index
      %c0_20 = arith.constant 0 : index
      %39 = vector.load %arg5[%c0_19, %c0_20] : memref<1x4xf32, #tpu.memory_space<vmem>>, vector<1x4xf32>
      tpu.vector_store %arg5[%c0_19, %c0_20], %38 {strides = array<i32>} : memref<1x4xf32, #tpu.memory_space<vmem>>, vector<1x4xf32>,
    } else {
    }
    %c0_13 = arith.constant 0 : index
    %c0_14 = arith.constant 0 : index
    %33 = vector.load %arg5[%c0_13, %c0_14] : memref<1x4xf32, #tpu.memory_space<vmem>>, vector<1x4xf32>
    %cst_15 = arith.constant dense<0.000000e+00> : vector<4xf32>
    %34 = vector.multi_reduction <add>, %28, %cst_15 [0] : vector<256x4xf32> to vector<4xf32>
    %35 = vector.shape_cast %34 : vector<4xf32> to vector<1x4xf32>
    %36 = arith.addf %33, %35 : vector<1x4xf32>
    %c0_16 = arith.constant 0 : index
    %c0_17 = arith.constant 0 : index
    %37 = vector.load %arg5[%c0_16, %c0_17] : memref<1x4xf32, #tpu.memory_space<vmem>>, vector<1x4xf32>
    tpu.vector_store %arg5[%c0_16, %c0_17], %36 {strides = array<i32>} : memref<1x4xf32, #tpu.memory_space<vmem>>, vector<1x4xf32>,
    return
  }
  func.func @transform_0(%arg0: i32) -> (i32, i32) {
    %c0_i32 = arith.constant 0 : i32
    %c0_i32_0 = arith.constant 0 : i32
    return %arg0, %c0_i32 : i32, i32
  }
  func.func @transform_1(%arg0: i32) -> (i32, i32) {
    %c0_i32 = arith.constant 0 : i32
    %c0_i32_0 = arith.constant 0 : i32
    %c0_i32_1 = arith.constant 0 : i32
    return %c0_i32, %c0_i32_0 : i32, i32
  }
  func.func @transform_2(%arg0: i32) -> (i32, i32) {
    %c0_i32 = arith.constant 0 : i32
    %c0_i32_0 = arith.constant 0 : i32
    %c0_i32_1 = arith.constant 0 : i32
    return %c0_i32, %c0_i32_0 : i32, i32
  }
  func.func @transform_3(%arg0: i32) -> (i32, i32) {
    %c0_i32 = arith.constant 0 : i32
    %c0_i32_0 = arith.constant 0 : i32
    return %arg0, %c0_i32 : i32, i32
  }
  func.func @transform_4(%arg0: i32) -> (i32, i32) {
    %c0_i32 = arith.constant 0 : i32
    %c0_i32_0 = arith.constant 0 : i32
    %c0_i32_1 = arith.constant 0 : i32
    return %c0_i32, %c0_i32_0 : i32, i32
  }
}

</mosaic_0001>

<llo_original>
// kernel: tpu_custom_call.1
$region0: #{tpu_custom_call.1}
  #allocation0 [shape = 'u32[]', space=smem, size = 0x4, offset = 0x4, fixed_abs, tag = 'smem constant byte address 0x4 - core index']
  #allocation1 [shape = 'u32[144,128]{1,0:T(1,128)}', space=vmem, size = 0x12000, scoped, tag = 'internal scratch']
  %s0 = inlined_call_operand.hbm [shape: f32[256,128], index: 0, kind: input, shape index: {}]
  %s1 = inlined_call_operand.vmem [shape: f32[128,4], index: 1, kind: input, shape index: {}]
  %s2 = inlined_call_operand.vmem [shape: f32[1,4], index: 2, kind: input, shape index: {}]
  %s3 = inlined_call_operand.vmem [shape: f32[256,4], index: 3, kind: output, shape index: {0}]
  %s4 = inlined_call_operand.hbm [shape: f32[1,4], index: 4, kind: output, shape index: {1}]
  %5 = xla_tuple %s3, %s4
  %s6 = sld [smem:[#allocation0]]
  $region38: #{tpu_custom_call.1} parent=0
    _
  %s8 = ssub.s32 1, %s6
  %s9 = scalar_select 0, %s8, %s6
  $region1: #{tpu_custom_call.1} parent=0
    #allocation2 [shape = 'u8[131072]{0}', space=vmem, size = 0x20000, scoped, tag = 'input window, operand 0, single buffered']
    #allocation3 [shape = 's32[1]{0}', space=sflag, size = 0x4, scoped, tag = 'scoped memory for tpu_custom_call.1']
    #allocation4 [shape = 's32[1]{0}', space=sflag, size = 0x4, scoped, tag = 'scoped memory for tpu_custom_call.1']
    #allocation5 [shape = 'u8[512]{0}', space=vmem, size = 0x400, scoped, tag = 'output window, operand 1, single buffered']
    %10 = vsyncpa [#allocation3], 0
    %11 = vsyncpa [#allocation4], 0
    // Predicated region
    $region2: #{tpu_custom_call.1} parent=1 // pred_check
      _
    $region3: #{tpu_custom_call.1} parent=1 // pred_check_branch
      %13 = sbr.rel (0) target = $region5
    $region4: #{tpu_custom_call.1} parent=1 // pred_region
      %s15 = ssub.s32 4096, 4096
      %16 = vsyncadd [#allocation3], %s15
      %s17 = sshll.u32 [#allocation2], 4
      %s18 = int_to_ptr.vmem [resolvable:$true] %s17
      %23 = dma.hbm_to_vmem [thread:$0]  %s0, 4096, %s18, [#allocation3], 128, 128, 8
    $region5: #{tpu_custom_call.1} parent=1 // pred_fallthru
      _
    // Predicated region
    $region6: #{tpu_custom_call.1} parent=1 // pred_check
      _
    $region7: #{tpu_custom_call.1} parent=1 // pred_check_branch
      %25 = sbr.rel (0) target = $region9
    $region8: #{tpu_custom_call.1} parent=1 // pred_region
      _
    $region9: #{tpu_custom_call.1} parent=1 // pred_fallthru
      _
    // Predicated region
    $region10: #{tpu_custom_call.1} parent=1 // pred_check
      _
    $region11: #{tpu_custom_call.1} parent=1 // pred_check_branch
      %27 = sbr.rel (0) target = $region13
    $region12: #{tpu_custom_call.1} parent=1 // pred_region
      _
    $region13: #{tpu_custom_call.1} parent=1 // pred_fallthru
      _
    // Predicated region
    $region14: #{tpu_custom_call.1} parent=1 // pred_check
      _
    $region15: #{tpu_custom_call.1} parent=1 // pred_check_branch
      %29 = sbr.rel (0) target = $region17
    $region16: #{tpu_custom_call.1} parent=1 // pred_region
      %30 = dma.done [#allocation3], 4096
    $region17: #{tpu_custom_call.1} parent=1 // pred_fallthru
      _
    %v31 = vld [vmem:[#allocation2] sm:$0xff]
    %v32 = vld [vmem:[#allocation2 + $0x8] sm:$0xff]
    %v33 = vld [vmem:[#allocation2 + $0x10] sm:$0xff]
    %v34 = vld [vmem:[#allocation2 + $0x18] sm:$0xff]
    %v35 = vld [vmem:[#allocation2 + $0x20] sm:$0xff]
    %v36 = vld [vmem:[#allocation2 + $0x28] sm:$0xff]
    %v37 = vld [vmem:[#allocation2 + $0x30] sm:$0xff]
    %v38 = vld [vmem:[#allocation2 + $0x38] sm:$0xff]
    %v39 = vld [vmem:[#allocation2 + $0x40] sm:$0xff]
    %v40 = vld [vmem:[#allocation2 + $0x48] sm:$0xff]
    %v41 = vld [vmem:[#allocation2 + $0x50] sm:$0xff]
    %v42 = vld [vmem:[#allocation2 + $0x58] sm:$0xff]
    %v43 = vld [vmem:[#allocation2 + $0x60] sm:$0xff]
    %v44 = vld [vmem:[#allocation2 + $0x68] sm:$0xff]
    %v45 = vld [vmem:[#allocation2 + $0x70] sm:$0xff]
    %v46 = vld [vmem:[#allocation2 + $0x78] sm:$0xff]
    %v47 = vld [vmem:[#allocation2 + $0x80] sm:$0xff]
    %v48 = vld [vmem:[#allocation2 + $0x88] sm:$0xff]
    %v49 = vld [vmem:[#allocation2 + $0x90] sm:$0xff]
    %v50 = vld [vmem:[#allocation2 + $0x98] sm:$0xff]
    %v51 = vld [vmem:[#allocation2 + $0xa0] sm:$0xff]
    %v52 = vld [vmem:[#allocation2 + $0xa8] sm:$0xff]
    %v53 = vld [vmem:[#allocation2 + $0xb0] sm:$0xff]
    %v54 = vld [vmem:[#allocation2 + $0xb8] sm:$0xff]
    %v55 = vld [vmem:[#allocation2 + $0xc0] sm:$0xff]
    %v56 = vld [vmem:[#allocation2 + $0xc8] sm:$0xff]
    %v57 = vld [vmem:[#allocation2 + $0xd0] sm:$0xff]
    %v58 = vld [vmem:[#allocation2 + $0xd8] sm:$0xff]
    %v59 = vld [vmem:[#allocation2 + $0xe0] sm:$0xff]
    %v60 = vld [vmem:[#allocation2 + $0xe8] sm:$0xff]
    %v61 = vld [vmem:[#allocation2 + $0xf0] sm:$0xff]
    %v62 = vld [vmem:[#allocation2 + $0xf8] sm:$0xff]
    %v63 = vld [vmem:[%s1] sm:$0xff]
    %v64 = vld [vmem:[%s1 + $0x8] sm:$0xff]
    %v65 = vld [vmem:[%s1 + $0x10] sm:$0xff]
    %v66 = vld [vmem:[%s1 + $0x18] sm:$0xff]
    %v67 = vld [vmem:[%s1 + $0x20] sm:$0xff]
    %v68 = vld [vmem:[%s1 + $0x28] sm:$0xff]
    %v69 = vld [vmem:[%s1 + $0x30] sm:$0xff]
    %v70 = vld [vmem:[%s1 + $0x38] sm:$0xff]
    %v71 = vld [vmem:[%s1 + $0x40] sm:$0xff]
    %v72 = vld [vmem:[%s1 + $0x48] sm:$0xff]
    %v73 = vld [vmem:[%s1 + $0x50] sm:$0xff]
    %v74 = vld [vmem:[%s1 + $0x58] sm:$0xff]
    %v75 = vld [vmem:[%s1 + $0x60] sm:$0xff]
    %v76 = vld [vmem:[%s1 + $0x68] sm:$0xff]
    %v77 = vld [vmem:[%s1 + $0x70] sm:$0xff]
    %v78 = vld [vmem:[%s1 + $0x78] sm:$0xff]
    %v79 = vld [vmem:[%s2] sm:$0x1]
    %v81 = vlaneseq
    %v82 = vshrl.u32 %v81, 7
    %v83 = vsub.s32 0, %v82
    %v84 = vrot.slane %v79, %v83
    %86 = vmatprep.subr.mxu0 0.0
    %87 = vmatpush1.msra.mxu0 %v63
    %88 = vmatprep.subr.mxu0 0.0
    %89 = vmatpush1.msra.mxu0 %v64
    %90 = vmatprep.subr.mxu0 0.0
    %91 = vmatpush1.msra.mxu0 %v65
    %92 = vmatprep.subr.mxu0 0.0
    %93 = vmatpush1.msra.mxu0 %v66
    %94 = vmatprep.subr.mxu0 0.0
    %95 = vmatpush1.msra.mxu0 %v67
    %96 = vmatprep.subr.mxu0 0.0
    %97 = vmatpush1.msra.mxu0 %v68
    %98 = vmatprep.subr.mxu0 0.0
    %99 = vmatpush1.msra.mxu0 %v69
    %100 = vmatprep.subr.mxu0 0.0
    %101 = vmatpush1.msra.mxu0 %v70
    %102 = vmatprep.subr.mxu0 0.0
    %103 = vmatpush1.msra.mxu0 %v71
    %104 = vmatprep.subr.mxu0 0.0
    %105 = vmatpush1.msra.mxu0 %v72
    %106 = vmatprep.subr.mxu0 0.0
    %107 = vmatpush1.msra.mxu0 %v73
    %108 = vmatprep.subr.mxu0 0.0
    %109 = vmatpush1.msra.mxu0 %v74
    %110 = vmatprep.subr.mxu0 0.0
    %111 = vmatpush1.msra.mxu0 %v75
    %112 = vmatprep.subr.mxu0 0.0
    %113 = vmatpush1.msra.mxu0 %v76
    %114 = vmatprep.subr.mxu0 0.0
    %115 = vmatpush1.msra.mxu0 %v77
    %116 = vmatprep.subr.mxu0 0.0
    %117 = vmatpush1.msra.mxu0 %v78
    %118 = vmatprep.subr.mxu0 0.0
    %119 = vmatpush1.msra.mxu0 0.0
    %120 = vmatprep.subr.mxu0 0.0
    %121 = vmatpush1.msra.mxu0 0.0
    %122 = vmatprep.subr.mxu0 0.0
    %123 = vmatpush1.msra.mxu0 0.0
    %124 = vmatprep.subr.mxu0 0.0
    %125 = vmatpush1.msra.mxu0 0.0
    %126 = vmatprep.subr.mxu0 0.0
    %127 = vmatpush1.msra.mxu0 0.0
    %128 = vmatprep.subr.mxu0 0.0
    %129 = vmatpush1.msra.mxu0 0.0
    %130 = vmatprep.subr.mxu0 0.0
    %131 = vmatpush1.msra.mxu0 0.0
    %132 = vmatprep.subr.mxu0 0.0
    %133 = vmatpush1.msra.mxu0 0.0
    %134 = vmatprep.subr.mxu0 0.0
    %135 = vmatpush1.msra.mxu0 0.0
    %136 = vmatprep.subr.mxu0 0.0
    %137 = vmatpush1.msra.mxu0 0.0
    %138 = vmatprep.subr.mxu0 0.0
    %139 = vmatpush1.msra.mxu0 0.0
    %140 = vmatprep.subr.mxu0 0.0
    %141 = vmatpush1.msra.mxu0 0.0
    %142 = vmatprep.subr.mxu0 0.0
    %143 = vmatpush1.msra.mxu0 0.0
    %144 = vmatprep.subr.mxu0 0.0
    %145 = vmatpush1.msra.mxu0 0.0
    %146 = vmatprep.subr.mxu0 0.0
    %147 = vmatpush1.msra.mxu0 0.0
    %148 = vmatprep.subr.mxu0 0.0
    %149 = vmatpush1.msra.mxu0 0.0
    %150 = vmatprep.mubr.f32.mxu0 0.0
    %151 = vmatmul.mubr.f32.gmra.mrb[0].mxu0 %v31
    %v152 = vpop.f32.mrb[0].mxu0
    %v153 = vadd.f32 %v84, %v152
    %v154 = vpop.f32.mrb[0].mxu0
    %155 = vmatprep.mubr.f32.mxu0 0.0
    %156 = vmatmul.mubr.f32.gmra.mrb[0].mxu0 %v32
    %v157 = vpop.f32.mrb[0].mxu0
    %v158 = vadd.f32 %v84, %v157
    %v159 = vpop.f32.mrb[0].mxu0
    %160 = vmatprep.mubr.f32.mxu0 0.0
    %161 = vmatmul.mubr.f32.gmra.mrb[0].mxu0 %v33
    %v162 = vpop.f32.mrb[0].mxu0
    %v163 = vadd.f32 %v84, %v162
    %v164 = vpop.f32.mrb[0].mxu0
    %165 = vmatprep.mubr.f32.mxu0 0.0
    %166 = vmatmul.mubr.f32.gmra.mrb[0].mxu0 %v34
    %v167 = vpop.f32.mrb[0].mxu0
    %v168 = vadd.f32 %v84, %v167
    %v169 = vpop.f32.mrb[0].mxu0
    %170 = vmatprep.mubr.f32.mxu0 0.0
    %171 = vmatmul.mubr.f32.gmra.mrb[0].mxu0 %v35
    %v172 = vpop.f32.mrb[0].mxu0
    %v173 = vadd.f32 %v84, %v172
    %v174 = vpop.f32.mrb[0].mxu0
    %175 = vmatprep.mubr.f32.mxu0 0.0
    %176 = vmatmul.mubr.f32.gmra.mrb[0].mxu0 %v36
    %v177 = vpop.f32.mrb[0].mxu0
    %v178 = vadd.f32 %v84, %v177
    %v179 = vpop.f32.mrb[0].mxu0
    %180 = vmatprep.mubr.f32.mxu0 0.0
    %181 = vmatmul.mubr.f32.gmra.mrb[0].mxu0 %v37
    %v182 = vpop.f32.mrb[0].mxu0
    %v183 = vadd.f32 %v84, %v182
    %v184 = vpop.f32.mrb[0].mxu0
    %185 = vmatprep.mubr.f32.mxu0 0.0
    %186 = vmatmul.mubr.f32.gmra.mrb[0].mxu0 %v38
    %v187 = vpop.f32.mrb[0].mxu0
    %v188 = vadd.f32 %v84, %v187
    %v189 = vpop.f32.mrb[0].mxu0
    %190 = vmatprep.mubr.f32.mxu0 0.0
    %191 = vmatmul.mubr.f32.gmra.mrb[0].mxu0 %v39
    %v192 = vpop.f32.mrb[0].mxu0
    %v193 = vadd.f32 %v84, %v192
    %v194 = vpop.f32.mrb[0].mxu0
    %195 = vmatprep.mubr.f32.mxu0 0.0
    %196 = vmatmul.mubr.f32.gmra.mrb[0].mxu0 %v40
    %v197 = vpop.f32.mrb[0].mxu0
    %v198 = vadd.f32 %v84, %v197
    %v199 = vpop.f32.mrb[0].mxu0
    %200 = vmatprep.mubr.f32.mxu0 0.0
    %201 = vmatmul.mubr.f32.gmra.mrb[0].mxu0 %v41
    %v202 = vpop.f32.mrb[0].mxu0
    %v203 = vadd.f32 %v84, %v202
    %v204 = vpop.f32.mrb[0].mxu0
    %205 = vmatprep.mubr.f32.mxu0 0.0
    %206 = vmatmul.mubr.f32.gmra.mrb[0].mxu0 %v42
    %v207 = vpop.f32.mrb[0].mxu0
    %v208 = vadd.f32 %v84, %v207
    %v209 = vpop.f32.mrb[0].mxu0
    %210 = vmatprep.mubr.f32.mxu0 0.0
    %211 = vmatmul.mubr.f32.gmra.mrb[0].mxu0 %v43
    %v212 = vpop.f32.mrb[0].mxu0
    %v213 = vadd.f32 %v84, %v212
    %v214 = vpop.f32.mrb[0].mxu0
    %215 = vmatprep.mubr.f32.mxu0 0.0
    %216 = vmatmul.mubr.f32.gmra.mrb[0].mxu0 %v44
    %v217 = vpop.f32.mrb[0].mxu0
    %v218 = vadd.f32 %v84, %v217
    %v219 = vpop.f32.mrb[0].mxu0
    %220 = vmatprep.mubr.f32.mxu0 0.0
    %221 = vmatmul.mubr.f32.gmra.mrb[0].mxu0 %v45
    %v222 = vpop.f32.mrb[0].mxu0
    %v223 = vadd.f32 %v84, %v222
    %v224 = vpop.f32.mrb[0].mxu0
    %225 = vmatprep.mubr.f32.mxu0 0.0
    %226 = vmatmul.mubr.f32.gmra.mrb[0].mxu0 %v46
    %v227 = vpop.f32.mrb[0].mxu0
    %v228 = vadd.f32 %v84, %v227
    %v229 = vpop.f32.mrb[0].mxu0
    %230 = vmatprep.mubr.f32.mxu0 0.0
    %231 = vmatmul.mubr.f32.gmra.mrb[0].mxu0 %v47
    %v232 = vpop.f32.mrb[0].mxu0
    %v233 = vadd.f32 %v84, %v232
    %v234 = vpop.f32.mrb[0].mxu0
    %235 = vmatprep.mubr.f32.mxu0 0.0
    %236 = vmatmul.mubr.f32.gmra.mrb[0].mxu0 %v48
    %v237 = vpop.f32.mrb[0].mxu0
    %v238 = vadd.f32 %v84, %v237
    %v239 = vpop.f32.mrb[0].mxu0
    %240 = vmatprep.mubr.f32.mxu0 0.0
    %241 = vmatmul.mubr.f32.gmra.mrb[0].mxu0 %v49
    %v242 = vpop.f32.mrb[0].mxu0
    %v243 = vadd.f32 %v84, %v242
    %v244 = vpop.f32.mrb[0].mxu0
    %245 = vmatprep.mubr.f32.mxu0 0.0
    %246 = vmatmul.mubr.f32.gmra.mrb[0].mxu0 %v50
    %v247 = vpop.f32.mrb[0].mxu0
    %v248 = vadd.f32 %v84, %v247
    %v249 = vpop.f32.mrb[0].mxu0
    %250 = vmatprep.mubr.f32.mxu0 0.0
    %251 = vmatmul.mubr.f32.gmra.mrb[0].mxu0 %v51
    %v252 = vpop.f32.mrb[0].mxu0
    %v253 = vadd.f32 %v84, %v252
    %v254 = vpop.f32.mrb[0].mxu0
    %255 = vmatprep.mubr.f32.mxu0 0.0
    %256 = vmatmul.mubr.f32.gmra.mrb[0].mxu0 %v52
    %v257 = vpop.f32.mrb[0].mxu0
    %v258 = vadd.f32 %v84, %v257
    %v259 = vpop.f32.mrb[0].mxu0
    %260 = vmatprep.mubr.f32.mxu0 0.0
    %261 = vmatmul.mubr.f32.gmra.mrb[0].mxu0 %v53
    %v262 = vpop.f32.mrb[0].mxu0
    %v263 = vadd.f32 %v84, %v262
    %v264 = vpop.f32.mrb[0].mxu0
    %265 = vmatprep.mubr.f32.mxu0 0.0
    %266 = vmatmul.mubr.f32.gmra.mrb[0].mxu0 %v54
    %v267 = vpop.f32.mrb[0].mxu0
    %v268 = vadd.f32 %v84, %v267
    %v269 = vpop.f32.mrb[0].mxu0
    %270 = vmatprep.mubr.f32.mxu0 0.0
    %271 = vmatmul.mubr.f32.gmra.mrb[0].mxu0 %v55
    %v272 = vpop.f32.mrb[0].mxu0
    %v273 = vadd.f32 %v84, %v272
    %v274 = vpop.f32.mrb[0].mxu0
    %275 = vmatprep.mubr.f32.mxu0 0.0
    %276 = vmatmul.mubr.f32.gmra.mrb[0].mxu0 %v56
    %v277 = vpop.f32.mrb[0].mxu0
    %v278 = vadd.f32 %v84, %v277
    %v279 = vpop.f32.mrb[0].mxu0
    %280 = vmatprep.mubr.f32.mxu0 0.0
    %281 = vmatmul.mubr.f32.gmra.mrb[0].mxu0 %v57
    %v282 = vpop.f32.mrb[0].mxu0
    %v283 = vadd.f32 %v84, %v282
    %v284 = vpop.f32.mrb[0].mxu0
    %285 = vmatprep.mubr.f32.mxu0 0.0
    %286 = vmatmul.mubr.f32.gmra.mrb[0].mxu0 %v58
    %v287 = vpop.f32.mrb[0].mxu0
    %v288 = vadd.f32 %v84, %v287
    %v289 = vpop.f32.mrb[0].mxu0
    %290 = vmatprep.mubr.f32.mxu0 0.0
    %291 = vmatmul.mubr.f32.gmra.mrb[0].mxu0 %v59
    %v292 = vpop.f32.mrb[0].mxu0
    %v293 = vadd.f32 %v84, %v292
    %v294 = vpop.f32.mrb[0].mxu0
    %295 = vmatprep.mubr.f32.mxu0 0.0
    %296 = vmatmul.mubr.f32.gmra.mrb[0].mxu0 %v60
    %v297 = vpop.f32.mrb[0].mxu0
    %v298 = vadd.f32 %v84, %v297
    %v299 = vpop.f32.mrb[0].mxu0
    %300 = vmatprep.mubr.f32.mxu0 0.0
    %301 = vmatmul.mubr.f32.gmra.mrb[0].mxu0 %v61
    %v302 = vpop.f32.mrb[0].mxu0
    %v303 = vadd.f32 %v84, %v302
    %v304 = vpop.f32.mrb[0].mxu0
    %305 = vmatprep.mubr.f32.mxu0 0.0
    %306 = vmatmul.mubr.f32.gmra.mrb[0].mxu0 %v62
    %v307 = vpop.f32.mrb[0].mxu0
    %v308 = vadd.f32 %v84, %v307
    %v309 = vpop.f32.mrb[0].mxu0
    %310 = vdwg.mxu0
    %vm311 = vcmask 31744
    %v312 = vsel %vm311, %v153, -inf
    %313 = vmax.xlane.f32.xlu0 %v312
    %v314 = vpop.xlane.xlu0 %313
    %v315 = vsel %vm311, %v158, -inf
    %316 = vmax.xlane.f32.xlu0 %v315
    %v317 = vpop.xlane.xlu0 %316
    %v318 = vsel %vm311, %v163, -inf
    %319 = vmax.xlane.f32.xlu0 %v318
    %v320 = vpop.xlane.xlu0 %319
    %v321 = vsel %vm311, %v168, -inf
    %322 = vmax.xlane.f32.xlu0 %v321
    %v323 = vpop.xlane.xlu0 %322
    %v324 = vsel %vm311, %v173, -inf
    %325 = vmax.xlane.f32.xlu0 %v324
    %v326 = vpop.xlane.xlu0 %325
    %v327 = vsel %vm311, %v178, -inf
    %328 = vmax.xlane.f32.xlu0 %v327
    %v329 = vpop.xlane.xlu0 %328
    %v330 = vsel %vm311, %v183, -inf
    %331 = vmax.xlane.f32.xlu0 %v330
    %v332 = vpop.xlane.xlu0 %331
    %v333 = vsel %vm311, %v188, -inf
    %334 = vmax.xlane.f32.xlu0 %v333
    %v335 = vpop.xlane.xlu0 %334
    %v336 = vsel %vm311, %v193, -inf
    %337 = vmax.xlane.f32.xlu0 %v336
    %v338 = vpop.xlane.xlu0 %337
    %v339 = vsel %vm311, %v198, -inf
    %340 = vmax.xlane.f32.xlu0 %v339
    %v341 = vpop.xlane.xlu0 %340
    %v342 = vsel %vm311, %v203, -inf
    %343 = vmax.xlane.f32.xlu0 %v342
    %v344 = vpop.xlane.xlu0 %343
    %v345 = vsel %vm311, %v208, -inf
    %346 = vmax.xlane.f32.xlu0 %v345
    %v347 = vpop.xlane.xlu0 %346
    %v348 = vsel %vm311, %v213, -inf
    %349 = vmax.xlane.f32.xlu0 %v348
    %v350 = vpop.xlane.xlu0 %349
    %v351 = vsel %vm311, %v218, -inf
    %352 = vmax.xlane.f32.xlu0 %v351
    %v353 = vpop.xlane.xlu0 %352
    %v354 = vsel %vm311, %v223, -inf
    %355 = vmax.xlane.f32.xlu0 %v354
    %v356 = vpop.xlane.xlu0 %355
    %v357 = vsel %vm311, %v228, -inf
    %358 = vmax.xlane.f32.xlu0 %v357
    %v359 = vpop.xlane.xlu0 %358
    %v360 = vsel %vm311, %v233, -inf
    %361 = vmax.xlane.f32.xlu0 %v360
    %v362 = vpop.xlane.xlu0 %361
    %v363 = vsel %vm311, %v238, -inf
    %364 = vmax.xlane.f32.xlu0 %v363
    %v365 = vpop.xlane.xlu0 %364
    %v366 = vsel %vm311, %v243, -inf
    %367 = vmax.xlane.f32.xlu0 %v366
    %v368 = vpop.xlane.xlu0 %367
    %v369 = vsel %vm311, %v248, -inf
    %370 = vmax.xlane.f32.xlu0 %v369
    %v371 = vpop.xlane.xlu0 %370
    %v372 = vsel %vm311, %v253, -inf
    %373 = vmax.xlane.f32.xlu0 %v372
    %v374 = vpop.xlane.xlu0 %373
    %v375 = vsel %vm311, %v258, -inf
    %376 = vmax.xlane.f32.xlu0 %v375
    %v377 = vpop.xlane.xlu0 %376
    %v378 = vsel %vm311, %v263, -inf
    %379 = vmax.xlane.f32.xlu0 %v378
    %v380 = vpop.xlane.xlu0 %379
    %v381 = vsel %vm311, %v268, -inf
    %382 = vmax.xlane.f32.xlu0 %v381
    %v383 = vpop.xlane.xlu0 %382
    %v384 = vsel %vm311, %v273, -inf
    %385 = vmax.xlane.f32.xlu0 %v384
    %v386 = vpop.xlane.xlu0 %385
    %v387 = vsel %vm311, %v278, -inf
    %388 = vmax.xlane.f32.xlu0 %v387
    %v389 = vpop.xlane.xlu0 %388
    %v390 = vsel %vm311, %v283, -inf
    %391 = vmax.xlane.f32.xlu0 %v390
    %v392 = vpop.xlane.xlu0 %391
    %v393 = vsel %vm311, %v288, -inf
    %394 = vmax.xlane.f32.xlu0 %v393
    %v395 = vpop.xlane.xlu0 %394
    %v396 = vsel %vm311, %v293, -inf
    %397 = vmax.xlane.f32.xlu0 %v396
    %v398 = vpop.xlane.xlu0 %397
    %v399 = vsel %vm311, %v298, -inf
    %400 = vmax.xlane.f32.xlu0 %v399
    %v401 = vpop.xlane.xlu0 %400
    %v402 = vsel %vm311, %v303, -inf
    %403 = vmax.xlane.f32.xlu0 %v402
    %v404 = vpop.xlane.xlu0 %403
    %v405 = vsel %vm311, %v308, -inf
    %406 = vmax.xlane.f32.xlu0 %v405
    %v407 = vpop.xlane.xlu0 %406
    %v408 = vsub.f32 %v153, %v314
    %v409 = vsub.f32 %v158, %v317
    %v410 = vsub.f32 %v163, %v320
    %v411 = vsub.f32 %v168, %v323
    %v412 = vsub.f32 %v173, %v326
    %v413 = vsub.f32 %v178, %v329
    %v414 = vsub.f32 %v183, %v332
    %v415 = vsub.f32 %v188, %v335
    %v416 = vsub.f32 %v193, %v338
    %v417 = vsub.f32 %v198, %v341
    %v418 = vsub.f32 %v203, %v344
    %v419 = vsub.f32 %v208, %v347
    %v420 = vsub.f32 %v213, %v350
    %v421 = vsub.f32 %v218, %v353
    %v422 = vsub.f32 %v223, %v356
    %v423 = vsub.f32 %v228, %v359
    %v424 = vsub.f32 %v233, %v362
    %v425 = vsub.f32 %v238, %v365
    %v426 = vsub.f32 %v243, %v368
    %v427 = vsub.f32 %v248, %v371
    %v428 = vsub.f32 %v253, %v374
    %v429 = vsub.f32 %v258, %v377
    %v430 = vsub.f32 %v263, %v380
    %v431 = vsub.f32 %v268, %v383
    %v432 = vsub.f32 %v273, %v386
    %v433 = vsub.f32 %v278, %v389
    %v434 = vsub.f32 %v283, %v392
    %v435 = vsub.f32 %v288, %v395
    %v436 = vsub.f32 %v293, %v398
    %v437 = vsub.f32 %v298, %v401
    %v438 = vsub.f32 %v303, %v404
    %v439 = vsub.f32 %v308, %v407
    %v440 = vmul.f32 %v408, 1.442695
    %v441 = vpow.pop %v440
    %v442 = vmul.f32 %v409, 1.442695
    %v443 = vpow.pop %v442
    %v444 = vmul.f32 %v410, 1.442695
    %v445 = vpow.pop %v444
    %v446 = vmul.f32 %v411, 1.442695
    %v447 = vpow.pop %v446
    %v448 = vmul.f32 %v412, 1.442695
    %v449 = vpow.pop %v448
    %v450 = vmul.f32 %v413, 1.442695
    %v451 = vpow.pop %v450
    %v452 = vmul.f32 %v414, 1.442695
    %v453 = vpow.pop %v452
    %v454 = vmul.f32 %v415, 1.442695
    %v455 = vpow.pop %v454
    %v456 = vmul.f32 %v416, 1.442695
    %v457 = vpow.pop %v456
    %v458 = vmul.f32 %v417, 1.442695
    %v459 = vpow.pop %v458
    %v460 = vmul.f32 %v418, 1.442695
    %v461 = vpow.pop %v460
    %v462 = vmul.f32 %v419, 1.442695
    %v463 = vpow.pop %v462
    %v464 = vmul.f32 %v420, 1.442695
    %v465 = vpow.pop %v464
    %v466 = vmul.f32 %v421, 1.442695
    %v467 = vpow.pop %v466
    %v468 = vmul.f32 %v422, 1.442695
    %v469 = vpow.pop %v468
    %v470 = vmul.f32 %v423, 1.442695
    %v471 = vpow.pop %v470
    %v472 = vmul.f32 %v424, 1.442695
    %v473 = vpow.pop %v472
    %v474 = vmul.f32 %v425, 1.442695
    %v475 = vpow.pop %v474
    %v476 = vmul.f32 %v426, 1.442695
    %v477 = vpow.pop %v476
    %v478 = vmul.f32 %v427, 1.442695
    %v479 = vpow.pop %v478
    %v480 = vmul.f32 %v428, 1.442695
    %v481 = vpow.pop %v480
    %v482 = vmul.f32 %v429, 1.442695
    %v483 = vpow.pop %v482
    %v484 = vmul.f32 %v430, 1.442695
    %v485 = vpow.pop %v484
    %v486 = vmul.f32 %v431, 1.442695
    %v487 = vpow.pop %v486
    %v488 = vmul.f32 %v432, 1.442695
    %v489 = vpow.pop %v488
    %v490 = vmul.f32 %v433, 1.442695
    %v491 = vpow.pop %v490
    %v492 = vmul.f32 %v434, 1.442695
    %v493 = vpow.pop %v492
    %v494 = vmul.f32 %v435, 1.442695
    %v495 = vpow.pop %v494
    %v496 = vmul.f32 %v436, 1.442695
    %v497 = vpow.pop %v496
    %v498 = vmul.f32 %v437, 1.442695
    %v499 = vpow.pop %v498
    %v500 = vmul.f32 %v438, 1.442695
    %v501 = vpow.pop %v500
    %v502 = vmul.f32 %v439, 1.442695
    %v503 = vpow.pop %v502
    %v504 = vsel %vm311, %v441, 0.0
    %505 = vadd.xlane.f32.xlu0 %v504
    %v506 = vpop.xlane.xlu0 %505
    %v507 = vsel %vm311, %v443, 0.0
    %508 = vadd.xlane.f32.xlu0 %v507
    %v509 = vpop.xlane.xlu0 %508
    %v510 = vsel %vm311, %v445, 0.0
    %511 = vadd.xlane.f32.xlu0 %v510
    %v512 = vpop.xlane.xlu0 %511
    %v513 = vsel %vm311, %v447, 0.0
    %514 = vadd.xlane.f32.xlu0 %v513
    %v515 = vpop.xlane.xlu0 %514
    %v516 = vsel %vm311, %v449, 0.0
    %517 = vadd.xlane.f32.xlu0 %v516
    %v518 = vpop.xlane.xlu0 %517
    %v519 = vsel %vm311, %v451, 0.0
    %520 = vadd.xlane.f32.xlu0 %v519
    %v521 = vpop.xlane.xlu0 %520
    %v522 = vsel %vm311, %v453, 0.0
    %523 = vadd.xlane.f32.xlu0 %v522
    %v524 = vpop.xlane.xlu0 %523
    %v525 = vsel %vm311, %v455, 0.0
    %526 = vadd.xlane.f32.xlu0 %v525
    %v527 = vpop.xlane.xlu0 %526
    %v528 = vsel %vm311, %v457, 0.0
    %529 = vadd.xlane.f32.xlu0 %v528
    %v530 = vpop.xlane.xlu0 %529
    %v531 = vsel %vm311, %v459, 0.0
    %532 = vadd.xlane.f32.xlu0 %v531
    %v533 = vpop.xlane.xlu0 %532
    %v534 = vsel %vm311, %v461, 0.0
    %535 = vadd.xlane.f32.xlu0 %v534
    %v536 = vpop.xlane.xlu0 %535
    %v537 = vsel %vm311, %v463, 0.0
    %538 = vadd.xlane.f32.xlu0 %v537
    %v539 = vpop.xlane.xlu0 %538
    %v540 = vsel %vm311, %v465, 0.0
    %541 = vadd.xlane.f32.xlu0 %v540
    %v542 = vpop.xlane.xlu0 %541
    %v543 = vsel %vm311, %v467, 0.0
    %544 = vadd.xlane.f32.xlu0 %v543
    %v545 = vpop.xlane.xlu0 %544
    %v546 = vsel %vm311, %v469, 0.0
    %547 = vadd.xlane.f32.xlu0 %v546
    %v548 = vpop.xlane.xlu0 %547
    %v549 = vsel %vm311, %v471, 0.0
    %550 = vadd.xlane.f32.xlu0 %v549
    %v551 = vpop.xlane.xlu0 %550
    %v552 = vsel %vm311, %v473, 0.0
    %553 = vadd.xlane.f32.xlu0 %v552
    %v554 = vpop.xlane.xlu0 %553
    %v555 = vsel %vm311, %v475, 0.0
    %556 = vadd.xlane.f32.xlu0 %v555
    %v557 = vpop.xlane.xlu0 %556
    %v558 = vsel %vm311, %v477, 0.0
    %559 = vadd.xlane.f32.xlu0 %v558
    %v560 = vpop.xlane.xlu0 %559
    %v561 = vsel %vm311, %v479, 0.0
    %562 = vadd.xlane.f32.xlu0 %v561
    %v563 = vpop.xlane.xlu0 %562
    %v564 = vsel %vm311, %v481, 0.0
    %565 = vadd.xlane.f32.xlu0 %v564
    %v566 = vpop.xlane.xlu0 %565
    %v567 = vsel %vm311, %v483, 0.0
    %568 = vadd.xlane.f32.xlu0 %v567
    %v569 = vpop.xlane.xlu0 %568
    %v570 = vsel %vm311, %v485, 0.0
    %571 = vadd.xlane.f32.xlu0 %v570
    %v572 = vpop.xlane.xlu0 %571
    %v573 = vsel %vm311, %v487, 0.0
    %574 = vadd.xlane.f32.xlu0 %v573
    %v575 = vpop.xlane.xlu0 %574
    %v576 = vsel %vm311, %v489, 0.0
    %577 = vadd.xlane.f32.xlu0 %v576
    %v578 = vpop.xlane.xlu0 %577
    %v579 = vsel %vm311, %v491, 0.0
    %580 = vadd.xlane.f32.xlu0 %v579
    %v581 = vpop.xlane.xlu0 %580
    %v582 = vsel %vm311, %v493, 0.0
    %583 = vadd.xlane.f32.xlu0 %v582
    %v584 = vpop.xlane.xlu0 %583
    %v585 = vsel %vm311, %v495, 0.0
    %586 = vadd.xlane.f32.xlu0 %v585
    %v587 = vpop.xlane.xlu0 %586
    %v588 = vsel %vm311, %v497, 0.0
    %589 = vadd.xlane.f32.xlu0 %v588
    %v590 = vpop.xlane.xlu0 %589
    %v591 = vsel %vm311, %v499, 0.0
    %592 = vadd.xlane.f32.xlu0 %v591
    %v593 = vpop.xlane.xlu0 %592
    %v594 = vsel %vm311, %v501, 0.0
    %595 = vadd.xlane.f32.xlu0 %v594
    %v596 = vpop.xlane.xlu0 %595
    %v597 = vsel %vm311, %v503, 0.0
    %598 = vadd.xlane.f32.xlu0 %v597
    %v599 = vpop.xlane.xlu0 %598
    %v600 = vrcp.pop %v506
    %v601 = vrcp.pop %v509
    %v602 = vrcp.pop %v512
    %v603 = vrcp.pop %v515
    %v604 = vrcp.pop %v518
    %v605 = vrcp.pop %v521
    %v606 = vrcp.pop %v524
    %v607 = vrcp.pop %v527
    %v608 = vrcp.pop %v530
    %v609 = vrcp.pop %v533
    %v610 = vrcp.pop %v536
    %v611 = vrcp.pop %v539
    %v612 = vrcp.pop %v542
    %v613 = vrcp.pop %v545
    %v614 = vrcp.pop %v548
    %v615 = vrcp.pop %v551
    %v616 = vrcp.pop %v554
    %v617 = vrcp.pop %v557
    %v618 = vrcp.pop %v560
    %v619 = vrcp.pop %v563
    %v620 = vrcp.pop %v566
    %v621 = vrcp.pop %v569
    %v622 = vrcp.pop %v572
    %v623 = vrcp.pop %v575
    %v624 = vrcp.pop %v578
    %v625 = vrcp.pop %v581
    %v626 = vrcp.pop %v584
    %v627 = vrcp.pop %v587
    %v628 = vrcp.pop %v590
    %v629 = vrcp.pop %v593
    %v630 = vrcp.pop %v596
    %v631 = vrcp.pop %v599
    %v632 = vmul.f32 %v441, %v600
    %v633 = vmul.f32 %v443, %v601
    %v634 = vmul.f32 %v445, %v602
    %v635 = vmul.f32 %v447, %v603
    %v636 = vmul.f32 %v449, %v604
    %v637 = vmul.f32 %v451, %v605
    %v638 = vmul.f32 %v453, %v606
    %v639 = vmul.f32 %v455, %v607
    %v640 = vmul.f32 %v457, %v608
    %v641 = vmul.f32 %v459, %v609
    %v642 = vmul.f32 %v461, %v610
    %v643 = vmul.f32 %v463, %v611
    %v644 = vmul.f32 %v465, %v612
    %v645 = vmul.f32 %v467, %v613
    %v646 = vmul.f32 %v469, %v614
    %v647 = vmul.f32 %v471, %v615
    %v648 = vmul.f32 %v473, %v616
    %v649 = vmul.f32 %v475, %v617
    %v650 = vmul.f32 %v477, %v618
    %v651 = vmul.f32 %v479, %v619
    %v652 = vmul.f32 %v481, %v620
    %v653 = vmul.f32 %v483, %v621
    %v654 = vmul.f32 %v485, %v622
    %v655 = vmul.f32 %v487, %v623
    %v656 = vmul.f32 %v489, %v624
    %v657 = vmul.f32 %v491, %v625
    %v658 = vmul.f32 %v493, %v626
    %v659 = vmul.f32 %v495, %v627
    %v660 = vmul.f32 %v497, %v628
    %v661 = vmul.f32 %v499, %v629
    %v662 = vmul.f32 %v501, %v630
    %v663 = vmul.f32 %v503, %v631
    %v664 = vlaneseq
    %v665 = vand.u32 %v664, 127
    %v666 = vsel %vm311, %v632, -inf
    %667 = vmax.xlane.f32.xlu0 %v666
    %v668 = vpop.xlane.xlu0 %667
    %v669 = vsel %vm311, %v633, -inf
    %670 = vmax.xlane.f32.xlu0 %v669
    %v671 = vpop.xlane.xlu0 %670
    %v672 = vsel %vm311, %v634, -inf
    %673 = vmax.xlane.f32.xlu0 %v672
    %v674 = vpop.xlane.xlu0 %673
    %v675 = vsel %vm311, %v635, -inf
    %676 = vmax.xlane.f32.xlu0 %v675
    %v677 = vpop.xlane.xlu0 %676
    %v678 = vsel %vm311, %v636, -inf
    %679 = vmax.xlane.f32.xlu0 %v678
    %v680 = vpop.xlane.xlu0 %679
    %v681 = vsel %vm311, %v637, -inf
    %682 = vmax.xlane.f32.xlu0 %v681
    %v683 = vpop.xlane.xlu0 %682
    %v684 = vsel %vm311, %v638, -inf
    %685 = vmax.xlane.f32.xlu0 %v684
    %v686 = vpop.xlane.xlu0 %685
    %v687 = vsel %vm311, %v639, -inf
    %688 = vmax.xlane.f32.xlu0 %v687
    %v689 = vpop.xlane.xlu0 %688
    %v690 = vsel %vm311, %v640, -inf
    %691 = vmax.xlane.f32.xlu0 %v690
    %v692 = vpop.xlane.xlu0 %691
    %v693 = vsel %vm311, %v641, -inf
    %694 = vmax.xlane.f32.xlu0 %v693
    %v695 = vpop.xlane.xlu0 %694
    %v696 = vsel %vm311, %v642, -inf
    %697 = vmax.xlane.f32.xlu0 %v696
    %v698 = vpop.xlane.xlu0 %697
    %v699 = vsel %vm311, %v643, -inf
    %700 = vmax.xlane.f32.xlu0 %v699
    %v701 = vpop.xlane.xlu0 %700
    %v702 = vsel %vm311, %v644, -inf
    %703 = vmax.xlane.f32.xlu0 %v702
    %v704 = vpop.xlane.xlu0 %703
    %v705 = vsel %vm311, %v645, -inf
    %706 = vmax.xlane.f32.xlu0 %v705
    %v707 = vpop.xlane.xlu0 %706
    %v708 = vsel %vm311, %v646, -inf
    %709 = vmax.xlane.f32.xlu0 %v708
    %v710 = vpop.xlane.xlu0 %709
    %v711 = vsel %vm311, %v647, -inf
    %712 = vmax.xlane.f32.xlu0 %v711
    %v713 = vpop.xlane.xlu0 %712
    %v714 = vsel %vm311, %v648, -inf
    %715 = vmax.xlane.f32.xlu0 %v714
    %v716 = vpop.xlane.xlu0 %715
    %v717 = vsel %vm311, %v649, -inf
    %718 = vmax.xlane.f32.xlu0 %v717
    %v719 = vpop.xlane.xlu0 %718
    %v720 = vsel %vm311, %v650, -inf
    %721 = vmax.xlane.f32.xlu0 %v720
    %v722 = vpop.xlane.xlu0 %721
    %v723 = vsel %vm311, %v651, -inf
    %724 = vmax.xlane.f32.xlu0 %v723
    %v725 = vpop.xlane.xlu0 %724
    %v726 = vsel %vm311, %v652, -inf
    %727 = vmax.xlane.f32.xlu0 %v726
    %v728 = vpop.xlane.xlu0 %727
    %v729 = vsel %vm311, %v653, -inf
    %730 = vmax.xlane.f32.xlu0 %v729
    %v731 = vpop.xlane.xlu0 %730
    %v732 = vsel %vm311, %v654, -inf
    %733 = vmax.xlane.f32.xlu0 %v732
    %v734 = vpop.xlane.xlu0 %733
    %v735 = vsel %vm311, %v655, -inf
    %736 = vmax.xlane.f32.xlu0 %v735
    %v737 = vpop.xlane.xlu0 %736
    %v738 = vsel %vm311, %v656, -inf
    %739 = vmax.xlane.f32.xlu0 %v738
    %v740 = vpop.xlane.xlu0 %739
    %v741 = vsel %vm311, %v657, -inf
    %742 = vmax.xlane.f32.xlu0 %v741
    %v743 = vpop.xlane.xlu0 %742
    %v744 = vsel %vm311, %v658, -inf
    %745 = vmax.xlane.f32.xlu0 %v744
    %v746 = vpop.xlane.xlu0 %745
    %v747 = vsel %vm311, %v659, -inf
    %748 = vmax.xlane.f32.xlu0 %v747
    %v749 = vpop.xlane.xlu0 %748
    %v750 = vsel %vm311, %v660, -inf
    %751 = vmax.xlane.f32.xlu0 %v750
    %v752 = vpop.xlane.xlu0 %751
    %v753 = vsel %vm311, %v661, -inf
    %754 = vmax.xlane.f32.xlu0 %v753
    %v755 = vpop.xlane.xlu0 %754
    %v756 = vsel %vm311, %v662, -inf
    %757 = vmax.xlane.f32.xlu0 %v756
    %v758 = vpop.xlane.xlu0 %757
    %v759 = vsel %vm311, %v663, -inf
    %760 = vmax.xlane.f32.xlu0 %v759
    %v761 = vpop.xlane.xlu0 %760
    %vm762 = vcmp.eq.f32.partialorder %v632, %v668
    %vm763 = vcmp.eq.f32.partialorder %v633, %v671
    %vm764 = vcmp.eq.f32.partialorder %v634, %v674
    %vm765 = vcmp.eq.f32.partialorder %v635, %v677
    %vm766 = vcmp.eq.f32.partialorder %v636, %v680
    %vm767 = vcmp.eq.f32.partialorder %v637, %v683
    %vm768 = vcmp.eq.f32.partialorder %v638, %v686
    %vm769 = vcmp.eq.f32.partialorder %v639, %v689
    %vm770 = vcmp.eq.f32.partialorder %v640, %v692
    %vm771 = vcmp.eq.f32.partialorder %v641, %v695
    %vm772 = vcmp.eq.f32.partialorder %v642, %v698
    %vm773 = vcmp.eq.f32.partialorder %v643, %v701
    %vm774 = vcmp.eq.f32.partialorder %v644, %v704
    %vm775 = vcmp.eq.f32.partialorder %v645, %v707
    %vm776 = vcmp.eq.f32.partialorder %v646, %v710
    %vm777 = vcmp.eq.f32.partialorder %v647, %v713
    %vm778 = vcmp.eq.f32.partialorder %v648, %v716
    %vm779 = vcmp.eq.f32.partialorder %v649, %v719
    %vm780 = vcmp.eq.f32.partialorder %v650, %v722
    %vm781 = vcmp.eq.f32.partialorder %v651, %v725
    %vm782 = vcmp.eq.f32.partialorder %v652, %v728
    %vm783 = vcmp.eq.f32.partialorder %v653, %v731
    %vm784 = vcmp.eq.f32.partialorder %v654, %v734
    %vm785 = vcmp.eq.f32.partialorder %v655, %v737
    %vm786 = vcmp.eq.f32.partialorder %v656, %v740
    %vm787 = vcmp.eq.f32.partialorder %v657, %v743
    %vm788 = vcmp.eq.f32.partialorder %v658, %v746
    %vm789 = vcmp.eq.f32.partialorder %v659, %v749
    %vm790 = vcmp.eq.f32.partialorder %v660, %v752
    %vm791 = vcmp.eq.f32.partialorder %v661, %v755
    %vm792 = vcmp.eq.f32.partialorder %v662, %v758
    %vm793 = vcmp.eq.f32.partialorder %v663, %v761
    %v794 = vsel %vm762, %v665, 4
    %v795 = vsel %vm763, %v665, 4
    %v796 = vsel %vm764, %v665, 4
    %v797 = vsel %vm765, %v665, 4
    %v798 = vsel %vm766, %v665, 4
    %v799 = vsel %vm767, %v665, 4
    %v800 = vsel %vm768, %v665, 4
    %v801 = vsel %vm769, %v665, 4
    %v802 = vsel %vm770, %v665, 4
    %v803 = vsel %vm771, %v665, 4
    %v804 = vsel %vm772, %v665, 4
    %v805 = vsel %vm773, %v665, 4
    %v806 = vsel %vm774, %v665, 4
    %v807 = vsel %vm775, %v665, 4
    %v808 = vsel %vm776, %v665, 4
    %v809 = vsel %vm777, %v665, 4
    %v810 = vsel %vm778, %v665, 4
    %v811 = vsel %vm779, %v665, 4
    %v812 = vsel %vm780, %v665, 4
    %v813 = vsel %vm781, %v665, 4
    %v814 = vsel %vm782, %v665, 4
    %v815 = vsel %vm783, %v665, 4
    %v816 = vsel %vm784, %v665, 4
    %v817 = vsel %vm785, %v665, 4
    %v818 = vsel %vm786, %v665, 4
    %v819 = vsel %vm787, %v665, 4
    %v820 = vsel %vm788, %v665, 4
    %v821 = vsel %vm789, %v665, 4
    %v822 = vsel %vm790, %v665, 4
    %v823 = vsel %vm791, %v665, 4
    %v824 = vsel %vm792, %v665, 4
    %v825 = vsel %vm793, %v665, 4
    %v826 = vsel %vm311, %v794, 2147483647
    %v827 = vand.u32 %v826, 65535
    %v828 = vshra.s32 %v826, 16
    %v829 = vcvt.s32.f32 %v827
    %v830 = vcvt.s32.f32 %v828
    %831 = vmin.xlane.f32.xlu0 %v830
    %v832 = vpop.xlane.xlu0 %831
    %vm833 = vcmp.eq.f32.partialorder %v830, %v832
    %v834 = vsel %vm833, %v829, inf
    %835 = vmin.xlane.f32.xlu0 %v834
    %v836 = vpop.xlane.xlu0 %835
    %v837 = vcvt.f32.s32 %v836
    %v838 = vcvt.f32.s32 %v832
    %v839 = vshll.u32 %v838, 16
    %v840 = vadd.s32 %v839, %v837
    %v841 = vsel %vm311, %v795, 2147483647
    %v842 = vand.u32 %v841, 65535
    %v843 = vshra.s32 %v841, 16
    %v844 = vcvt.s32.f32 %v842
    %v845 = vcvt.s32.f32 %v843
    %846 = vmin.xlane.f32.xlu0 %v845
    %v847 = vpop.xlane.xlu0 %846
    %vm848 = vcmp.eq.f32.partialorder %v845, %v847
    %v849 = vsel %vm848, %v844, inf
    %850 = vmin.xlane.f32.xlu0 %v849
    %v851 = vpop.xlane.xlu0 %850
    %v852 = vcvt.f32.s32 %v851
    %v853 = vcvt.f32.s32 %v847
    %v854 = vshll.u32 %v853, 16
    %v855 = vadd.s32 %v854, %v852
    %v856 = vsel %vm311, %v796, 2147483647
    %v857 = vand.u32 %v856, 65535
    %v858 = vshra.s32 %v856, 16
    %v859 = vcvt.s32.f32 %v857
    %v860 = vcvt.s32.f32 %v858
    %861 = vmin.xlane.f32.xlu0 %v860
    %v862 = vpop.xlane.xlu0 %861
    %vm863 = vcmp.eq.f32.partialorder %v860, %v862
    %v864 = vsel %vm863, %v859, inf
    %865 = vmin.xlane.f32.xlu0 %v864
    %v866 = vpop.xlane.xlu0 %865
    %v867 = vcvt.f32.s32 %v866
    %v868 = vcvt.f32.s32 %v862
    %v869 = vshll.u32 %v868, 16
    %v870 = vadd.s32 %v869, %v867
    %v871 = vsel %vm311, %v797, 2147483647
    %v872 = vand.u32 %v871, 65535
    %v873 = vshra.s32 %v871, 16
    %v874 = vcvt.s32.f32 %v872
    %v875 = vcvt.s32.f32 %v873
    %876 = vmin.xlane.f32.xlu0 %v875
    %v877 = vpop.xlane.xlu0 %876
    %vm878 = vcmp.eq.f32.partialorder %v875, %v877
    %v879 = vsel %vm878, %v874, inf
    %880 = vmin.xlane.f32.xlu0 %v879
    %v881 = vpop.xlane.xlu0 %880
    %v882 = vcvt.f32.s32 %v881
    %v883 = vcvt.f32.s32 %v877
    %v884 = vshll.u32 %v883, 16
    %v885 = vadd.s32 %v884, %v882
    %v886 = vsel %vm311, %v798, 2147483647
    %v887 = vand.u32 %v886, 65535
    %v888 = vshra.s32 %v886, 16
    %v889 = vcvt.s32.f32 %v887
    %v890 = vcvt.s32.f32 %v888
    %891 = vmin.xlane.f32.xlu0 %v890
    %v892 = vpop.xlane.xlu0 %891
    %vm893 = vcmp.eq.f32.partialorder %v890, %v892
    %v894 = vsel %vm893, %v889, inf
    %895 = vmin.xlane.f32.xlu0 %v894
    %v896 = vpop.xlane.xlu0 %895
    %v897 = vcvt.f32.s32 %v896
    %v898 = vcvt.f32.s32 %v892
    %v899 = vshll.u32 %v898, 16
    %v900 = vadd.s32 %v899, %v897
    %v901 = vsel %vm311, %v799, 2147483647
    %v902 = vand.u32 %v901, 65535
    %v903 = vshra.s32 %v901, 16
    %v904 = vcvt.s32.f32 %v902
    %v905 = vcvt.s32.f32 %v903
    %906 = vmin.xlane.f32.xlu0 %v905
    %v907 = vpop.xlane.xlu0 %906
    %vm908 = vcmp.eq.f32.partialorder %v905, %v907
    %v909 = vsel %vm908, %v904, inf
    %910 = vmin.xlane.f32.xlu0 %v909
    %v911 = vpop.xlane.xlu0 %910
    %v912 = vcvt.f32.s32 %v911
    %v913 = vcvt.f32.s32 %v907
    %v914 = vshll.u32 %v913, 16
    %v915 = vadd.s32 %v914, %v912
    %v916 = vsel %vm311, %v800, 2147483647
    %v917 = vand.u32 %v916, 65535
    %v918 = vshra.s32 %v916, 16
    %v919 = vcvt.s32.f32 %v917
    %v920 = vcvt.s32.f32 %v918
    %921 = vmin.xlane.f32.xlu0 %v920
    %v922 = vpop.xlane.xlu0 %921
    %vm923 = vcmp.eq.f32.partialorder %v920, %v922
    %v924 = vsel %vm923, %v919, inf
    %925 = vmin.xlane.f32.xlu0 %v924
    %v926 = vpop.xlane.xlu0 %925
    %v927 = vcvt.f32.s32 %v926
    %v928 = vcvt.f32.s32 %v922
    %v929 = vshll.u32 %v928, 16
    %v930 = vadd.s32 %v929, %v927
    %v931 = vsel %vm311, %v801, 2147483647
    %v932 = vand.u32 %v931, 65535
    %v933 = vshra.s32 %v931, 16
    %v934 = vcvt.s32.f32 %v932
    %v935 = vcvt.s32.f32 %v933
    %936 = vmin.xlane.f32.xlu0 %v935
    %v937 = vpop.xlane.xlu0 %936
    %vm938 = vcmp.eq.f32.partialorder %v935, %v937
    %v939 = vsel %vm938, %v934, inf
    %940 = vmin.xlane.f32.xlu0 %v939
    %v941 = vpop.xlane.xlu0 %940
    %v942 = vcvt.f32.s32 %v941
    %v943 = vcvt.f32.s32 %v937
    %v944 = vshll.u32 %v943, 16
    %v945 = vadd.s32 %v944, %v942
    %v946 = vsel %vm311, %v802, 2147483647
    %v947 = vand.u32 %v946, 65535
    %v948 = vshra.s32 %v946, 16
    %v949 = vcvt.s32.f32 %v947
    %v950 = vcvt.s32.f32 %v948
    %951 = vmin.xlane.f32.xlu0 %v950
    %v952 = vpop.xlane.xlu0 %951
    %vm953 = vcmp.eq.f32.partialorder %v950, %v952
    %v954 = vsel %vm953, %v949, inf
    %955 = vmin.xlane.f32.xlu0 %v954
    %v956 = vpop.xlane.xlu0 %955
    %v957 = vcvt.f32.s32 %v956
    %v958 = vcvt.f32.s32 %v952
    %v959 = vshll.u32 %v958, 16
    %v960 = vadd.s32 %v959, %v957
    %v961 = vsel %vm311, %v803, 2147483647
    %v962 = vand.u32 %v961, 65535
    %v963 = vshra.s32 %v961, 16
    %v964 = vcvt.s32.f32 %v962
    %v965 = vcvt.s32.f32 %v963
    %966 = vmin.xlane.f32.xlu0 %v965
    %v967 = vpop.xlane.xlu0 %966
    %vm968 = vcmp.eq.f32.partialorder %v965, %v967
    %v969 = vsel %vm968, %v964, inf
    %970 = vmin.xlane.f32.xlu0 %v969
    %v971 = vpop.xlane.xlu0 %970
    %v972 = vcvt.f32.s32 %v971
    %v973 = vcvt.f32.s32 %v967
    %v974 = vshll.u32 %v973, 16
    %v975 = vadd.s32 %v974, %v972
    %v976 = vsel %vm311, %v804, 2147483647
    %v977 = vand.u32 %v976, 65535
    %v978 = vshra.s32 %v976, 16
    %v979 = vcvt.s32.f32 %v977
    %v980 = vcvt.s32.f32 %v978
    %981 = vmin.xlane.f32.xlu0 %v980
    %v982 = vpop.xlane.xlu0 %981
    %vm983 = vcmp.eq.f32.partialorder %v980, %v982
    %v984 = vsel %vm983, %v979, inf
    %985 = vmin.xlane.f32.xlu0 %v984
    %v986 = vpop.xlane.xlu0 %985
    %v987 = vcvt.f32.s32 %v986
    %v988 = vcvt.f32.s32 %v982
    %v989 = vshll.u32 %v988, 16
    %v990 = vadd.s32 %v989, %v987
    %v991 = vsel %vm311, %v805, 2147483647
    %v992 = vand.u32 %v991, 65535
    %v993 = vshra.s32 %v991, 16
    %v994 = vcvt.s32.f32 %v992
    %v995 = vcvt.s32.f32 %v993
    %996 = vmin.xlane.f32.xlu0 %v995
    %v997 = vpop.xlane.xlu0 %996
    %vm998 = vcmp.eq.f32.partialorder %v995, %v997
    %v999 = vsel %vm998, %v994, inf
    %1000 = vmin.xlane.f32.xlu0 %v999
    %v1001 = vpop.xlane.xlu0 %1000
    %v1002 = vcvt.f32.s32 %v1001
    %v1003 = vcvt.f32.s32 %v997
    %v1004 = vshll.u32 %v1003, 16
    %v1005 = vadd.s32 %v1004, %v1002
    %v1006 = vsel %vm311, %v806, 2147483647
    %v1007 = vand.u32 %v1006, 65535
    %v1008 = vshra.s32 %v1006, 16
    %v1009 = vcvt.s32.f32 %v1007
    %v1010 = vcvt.s32.f32 %v1008
    %1011 = vmin.xlane.f32.xlu0 %v1010
    %v1012 = vpop.xlane.xlu0 %1011
    %vm1013 = vcmp.eq.f32.partialorder %v1010, %v1012
    %v1014 = vsel %vm1013, %v1009, inf
    %1015 = vmin.xlane.f32.xlu0 %v1014
    %v1016 = vpop.xlane.xlu0 %1015
    %v1017 = vcvt.f32.s32 %v1016
    %v1018 = vcvt.f32.s32 %v1012
    %v1019 = vshll.u32 %v1018, 16
    %v1020 = vadd.s32 %v1019, %v1017
    %v1021 = vsel %vm311, %v807, 2147483647
    %v1022 = vand.u32 %v1021, 65535
    %v1023 = vshra.s32 %v1021, 16
    %v1024 = vcvt.s32.f32 %v1022
    %v1025 = vcvt.s32.f32 %v1023
    %1026 = vmin.xlane.f32.xlu0 %v1025
    %v1027 = vpop.xlane.xlu0 %1026
    %vm1028 = vcmp.eq.f32.partialorder %v1025, %v1027
    %v1029 = vsel %vm1028, %v1024, inf
    %1030 = vmin.xlane.f32.xlu0 %v1029
    %v1031 = vpop.xlane.xlu0 %1030
    %v1032 = vcvt.f32.s32 %v1031
    %v1033 = vcvt.f32.s32 %v1027
    %v1034 = vshll.u32 %v1033, 16
    %v1035 = vadd.s32 %v1034, %v1032
    %v1036 = vsel %vm311, %v808, 2147483647
    %v1037 = vand.u32 %v1036, 65535
    %v1038 = vshra.s32 %v1036, 16
    %v1039 = vcvt.s32.f32 %v1037
    %v1040 = vcvt.s32.f32 %v1038
    %1041 = vmin.xlane.f32.xlu0 %v1040
    %v1042 = vpop.xlane.xlu0 %1041
    %vm1043 = vcmp.eq.f32.partialorder %v1040, %v1042
    %v1044 = vsel %vm1043, %v1039, inf
    %1045 = vmin.xlane.f32.xlu0 %v1044
    %v1046 = vpop.xlane.xlu0 %1045
    %v1047 = vcvt.f32.s32 %v1046
    %v1048 = vcvt.f32.s32 %v1042
    %v1049 = vshll.u32 %v1048, 16
    %v1050 = vadd.s32 %v1049, %v1047
    %v1051 = vsel %vm311, %v809, 2147483647
    %v1052 = vand.u32 %v1051, 65535
    %v1053 = vshra.s32 %v1051, 16
    %v1054 = vcvt.s32.f32 %v1052
    %v1055 = vcvt.s32.f32 %v1053
    %1056 = vmin.xlane.f32.xlu0 %v1055
    %v1057 = vpop.xlane.xlu0 %1056
    %vm1058 = vcmp.eq.f32.partialorder %v1055, %v1057
    %v1059 = vsel %vm1058, %v1054, inf
    %1060 = vmin.xlane.f32.xlu0 %v1059
    %v1061 = vpop.xlane.xlu0 %1060
    %v1062 = vcvt.f32.s32 %v1061
    %v1063 = vcvt.f32.s32 %v1057
    %v1064 = vshll.u32 %v1063, 16
    %v1065 = vadd.s32 %v1064, %v1062
    %v1066 = vsel %vm311, %v810, 2147483647
    %v1067 = vand.u32 %v1066, 65535
    %v1068 = vshra.s32 %v1066, 16
    %v1069 = vcvt.s32.f32 %v1067
    %v1070 = vcvt.s32.f32 %v1068
    %1071 = vmin.xlane.f32.xlu0 %v1070
    %v1072 = vpop.xlane.xlu0 %1071
    %vm1073 = vcmp.eq.f32.partialorder %v1070, %v1072
    %v1074 = vsel %vm1073, %v1069, inf
    %1075 = vmin.xlane.f32.xlu0 %v1074
    %v1076 = vpop.xlane.xlu0 %1075
    %v1077 = vcvt.f32.s32 %v1076
    %v1078 = vcvt.f32.s32 %v1072
    %v1079 = vshll.u32 %v1078, 16
    %v1080 = vadd.s32 %v1079, %v1077
    %v1081 = vsel %vm311, %v811, 2147483647
    %v1082 = vand.u32 %v1081, 65535
    %v1083 = vshra.s32 %v1081, 16
    %v1084 = vcvt.s32.f32 %v1082
    %v1085 = vcvt.s32.f32 %v1083
    %1086 = vmin.xlane.f32.xlu0 %v1085
    %v1087 = vpop.xlane.xlu0 %1086
    %vm1088 = vcmp.eq.f32.partialorder %v1085, %v1087
    %v1089 = vsel %vm1088, %v1084, inf
    %1090 = vmin.xlane.f32.xlu0 %v1089
    %v1091 = vpop.xlane.xlu0 %1090
    %v1092 = vcvt.f32.s32 %v1091
    %v1093 = vcvt.f32.s32 %v1087
    %v1094 = vshll.u32 %v1093, 16
    %v1095 = vadd.s32 %v1094, %v1092
    %v1096 = vsel %vm311, %v812, 2147483647
    %v1097 = vand.u32 %v1096, 65535
    %v1098 = vshra.s32 %v1096, 16
    %v1099 = vcvt.s32.f32 %v1097
    %v1100 = vcvt.s32.f32 %v1098
    %1101 = vmin.xlane.f32.xlu0 %v1100
    %v1102 = vpop.xlane.xlu0 %1101
    %vm1103 = vcmp.eq.f32.partialorder %v1100, %v1102
    %v1104 = vsel %vm1103, %v1099, inf
    %1105 = vmin.xlane.f32.xlu0 %v1104
    %v1106 = vpop.xlane.xlu0 %1105
    %v1107 = vcvt.f32.s32 %v1106
    %v1108 = vcvt.f32.s32 %v1102
    %v1109 = vshll.u32 %v1108, 16
    %v1110 = vadd.s32 %v1109, %v1107
    %v1111 = vsel %vm311, %v813, 2147483647
    %v1112 = vand.u32 %v1111, 65535
    %v1113 = vshra.s32 %v1111, 16
    %v1114 = vcvt.s32.f32 %v1112
    %v1115 = vcvt.s32.f32 %v1113
    %1116 = vmin.xlane.f32.xlu0 %v1115
    %v1117 = vpop.xlane.xlu0 %1116
    %vm1118 = vcmp.eq.f32.partialorder %v1115, %v1117
    %v1119 = vsel %vm1118, %v1114, inf
    %1120 = vmin.xlane.f32.xlu0 %v1119
    %v1121 = vpop.xlane.xlu0 %1120
    %v1122 = vcvt.f32.s32 %v1121
    %v1123 = vcvt.f32.s32 %v1117
    %v1124 = vshll.u32 %v1123, 16
    %v1125 = vadd.s32 %v1124, %v1122
    %v1126 = vsel %vm311, %v814, 2147483647
    %v1127 = vand.u32 %v1126, 65535
    %v1128 = vshra.s32 %v1126, 16
    %v1129 = vcvt.s32.f32 %v1127
    %v1130 = vcvt.s32.f32 %v1128
    %1131 = vmin.xlane.f32.xlu0 %v1130
    %v1132 = vpop.xlane.xlu0 %1131
    %vm1133 = vcmp.eq.f32.partialorder %v1130, %v1132
    %v1134 = vsel %vm1133, %v1129, inf
    %1135 = vmin.xlane.f32.xlu0 %v1134
    %v1136 = vpop.xlane.xlu0 %1135
    %v1137 = vcvt.f32.s32 %v1136
    %v1138 = vcvt.f32.s32 %v1132
    %v1139 = vshll.u32 %v1138, 16
    %v1140 = vadd.s32 %v1139, %v1137
    %v1141 = vsel %vm311, %v815, 2147483647
    %v1142 = vand.u32 %v1141, 65535
    %v1143 = vshra.s32 %v1141, 16
    %v1144 = vcvt.s32.f32 %v1142
    %v1145 = vcvt.s32.f32 %v1143
    %1146 = vmin.xlane.f32.xlu0 %v1145
    %v1147 = vpop.xlane.xlu0 %1146
    %vm1148 = vcmp.eq.f32.partialorder %v1145, %v1147
    %v1149 = vsel %vm1148, %v1144, inf
    %1150 = vmin.xlane.f32.xlu0 %v1149
    %v1151 = vpop.xlane.xlu0 %1150
    %v1152 = vcvt.f32.s32 %v1151
    %v1153 = vcvt.f32.s32 %v1147
    %v1154 = vshll.u32 %v1153, 16
    %v1155 = vadd.s32 %v1154, %v1152
    %v1156 = vsel %vm311, %v816, 2147483647
    %v1157 = vand.u32 %v1156, 65535
    %v1158 = vshra.s32 %v1156, 16
    %v1159 = vcvt.s32.f32 %v1157
    %v1160 = vcvt.s32.f32 %v1158
    %1161 = vmin.xlane.f32.xlu0 %v1160
    %v1162 = vpop.xlane.xlu0 %1161
    %vm1163 = vcmp.eq.f32.partialorder %v1160, %v1162
    %v1164 = vsel %vm1163, %v1159, inf
    %1165 = vmin.xlane.f32.xlu0 %v1164
    %v1166 = vpop.xlane.xlu0 %1165
    %v1167 = vcvt.f32.s32 %v1166
    %v1168 = vcvt.f32.s32 %v1162
    %v1169 = vshll.u32 %v1168, 16
    %v1170 = vadd.s32 %v1169, %v1167
    %v1171 = vsel %vm311, %v817, 2147483647
    %v1172 = vand.u32 %v1171, 65535
    %v1173 = vshra.s32 %v1171, 16
    %v1174 = vcvt.s32.f32 %v1172
    %v1175 = vcvt.s32.f32 %v1173
    %1176 = vmin.xlane.f32.xlu0 %v1175
    %v1177 = vpop.xlane.xlu0 %1176
    %vm1178 = vcmp.eq.f32.partialorder %v1175, %v1177
    %v1179 = vsel %vm1178, %v1174, inf
    %1180 = vmin.xlane.f32.xlu0 %v1179
    %v1181 = vpop.xlane.xlu0 %1180
    %v1182 = vcvt.f32.s32 %v1181
    %v1183 = vcvt.f32.s32 %v1177
    %v1184 = vshll.u32 %v1183, 16
    %v1185 = vadd.s32 %v1184, %v1182
    %v1186 = vsel %vm311, %v818, 2147483647
    %v1187 = vand.u32 %v1186, 65535
    %v1188 = vshra.s32 %v1186, 16
    %v1189 = vcvt.s32.f32 %v1187
    %v1190 = vcvt.s32.f32 %v1188
    %1191 = vmin.xlane.f32.xlu0 %v1190
    %v1192 = vpop.xlane.xlu0 %1191
    %vm1193 = vcmp.eq.f32.partialorder %v1190, %v1192
    %v1194 = vsel %vm1193, %v1189, inf
    %1195 = vmin.xlane.f32.xlu0 %v1194
    %v1196 = vpop.xlane.xlu0 %1195
    %v1197 = vcvt.f32.s32 %v1196
    %v1198 = vcvt.f32.s32 %v1192
    %v1199 = vshll.u32 %v1198, 16
    %v1200 = vadd.s32 %v1199, %v1197
    %v1201 = vsel %vm311, %v819, 2147483647
    %v1202 = vand.u32 %v1201, 65535
    %v1203 = vshra.s32 %v1201, 16
    %v1204 = vcvt.s32.f32 %v1202
    %v1205 = vcvt.s32.f32 %v1203
    %1206 = vmin.xlane.f32.xlu0 %v1205
    %v1207 = vpop.xlane.xlu0 %1206
    %vm1208 = vcmp.eq.f32.partialorder %v1205, %v1207
    %v1209 = vsel %vm1208, %v1204, inf
    %1210 = vmin.xlane.f32.xlu0 %v1209
    %v1211 = vpop.xlane.xlu0 %1210
    %v1212 = vcvt.f32.s32 %v1211
    %v1213 = vcvt.f32.s32 %v1207
    %v1214 = vshll.u32 %v1213, 16
    %v1215 = vadd.s32 %v1214, %v1212
    %v1216 = vsel %vm311, %v820, 2147483647
    %v1217 = vand.u32 %v1216, 65535
    %v1218 = vshra.s32 %v1216, 16
    %v1219 = vcvt.s32.f32 %v1217
    %v1220 = vcvt.s32.f32 %v1218
    %1221 = vmin.xlane.f32.xlu0 %v1220
    %v1222 = vpop.xlane.xlu0 %1221
    %vm1223 = vcmp.eq.f32.partialorder %v1220, %v1222
    %v1224 = vsel %vm1223, %v1219, inf
    %1225 = vmin.xlane.f32.xlu0 %v1224
    %v1226 = vpop.xlane.xlu0 %1225
    %v1227 = vcvt.f32.s32 %v1226
    %v1228 = vcvt.f32.s32 %v1222
    %v1229 = vshll.u32 %v1228, 16
    %v1230 = vadd.s32 %v1229, %v1227
    %v1231 = vsel %vm311, %v821, 2147483647
    %v1232 = vand.u32 %v1231, 65535
    %v1233 = vshra.s32 %v1231, 16
    %v1234 = vcvt.s32.f32 %v1232
    %v1235 = vcvt.s32.f32 %v1233
    %1236 = vmin.xlane.f32.xlu0 %v1235
    %v1237 = vpop.xlane.xlu0 %1236
    %vm1238 = vcmp.eq.f32.partialorder %v1235, %v1237
    %v1239 = vsel %vm1238, %v1234, inf
    %1240 = vmin.xlane.f32.xlu0 %v1239
    %v1241 = vpop.xlane.xlu0 %1240
    %v1242 = vcvt.f32.s32 %v1241
    %v1243 = vcvt.f32.s32 %v1237
    %v1244 = vshll.u32 %v1243, 16
    %v1245 = vadd.s32 %v1244, %v1242
    %v1246 = vsel %vm311, %v822, 2147483647
    %v1247 = vand.u32 %v1246, 65535
    %v1248 = vshra.s32 %v1246, 16
    %v1249 = vcvt.s32.f32 %v1247
    %v1250 = vcvt.s32.f32 %v1248
    %1251 = vmin.xlane.f32.xlu0 %v1250
    %v1252 = vpop.xlane.xlu0 %1251
    %vm1253 = vcmp.eq.f32.partialorder %v1250, %v1252
    %v1254 = vsel %vm1253, %v1249, inf
    %1255 = vmin.xlane.f32.xlu0 %v1254
    %v1256 = vpop.xlane.xlu0 %1255
    %v1257 = vcvt.f32.s32 %v1256
    %v1258 = vcvt.f32.s32 %v1252
    %v1259 = vshll.u32 %v1258, 16
    %v1260 = vadd.s32 %v1259, %v1257
    %v1261 = vsel %vm311, %v823, 2147483647
    %v1262 = vand.u32 %v1261, 65535
    %v1263 = vshra.s32 %v1261, 16
    %v1264 = vcvt.s32.f32 %v1262
    %v1265 = vcvt.s32.f32 %v1263
    %1266 = vmin.xlane.f32.xlu0 %v1265
    %v1267 = vpop.xlane.xlu0 %1266
    %vm1268 = vcmp.eq.f32.partialorder %v1265, %v1267
    %v1269 = vsel %vm1268, %v1264, inf
    %1270 = vmin.xlane.f32.xlu0 %v1269
    %v1271 = vpop.xlane.xlu0 %1270
    %v1272 = vcvt.f32.s32 %v1271
    %v1273 = vcvt.f32.s32 %v1267
    %v1274 = vshll.u32 %v1273, 16
    %v1275 = vadd.s32 %v1274, %v1272
    %v1276 = vsel %vm311, %v824, 2147483647
    %v1277 = vand.u32 %v1276, 65535
    %v1278 = vshra.s32 %v1276, 16
    %v1279 = vcvt.s32.f32 %v1277
    %v1280 = vcvt.s32.f32 %v1278
    %1281 = vmin.xlane.f32.xlu0 %v1280
    %v1282 = vpop.xlane.xlu0 %1281
    %vm1283 = vcmp.eq.f32.partialorder %v1280, %v1282
    %v1284 = vsel %vm1283, %v1279, inf
    %1285 = vmin.xlane.f32.xlu0 %v1284
    %v1286 = vpop.xlane.xlu0 %1285
    %v1287 = vcvt.f32.s32 %v1286
    %v1288 = vcvt.f32.s32 %v1282
    %v1289 = vshll.u32 %v1288, 16
    %v1290 = vadd.s32 %v1289, %v1287
    %v1291 = vsel %vm311, %v825, 2147483647
    %v1292 = vand.u32 %v1291, 65535
    %v1293 = vshra.s32 %v1291, 16
    %v1294 = vcvt.s32.f32 %v1292
    %v1295 = vcvt.s32.f32 %v1293
    %1296 = vmin.xlane.f32.xlu0 %v1295
    %v1297 = vpop.xlane.xlu0 %1296
    %vm1298 = vcmp.eq.f32.partialorder %v1295, %v1297
    %v1299 = vsel %vm1298, %v1294, inf
    %1300 = vmin.xlane.f32.xlu0 %v1299
    %v1301 = vpop.xlane.xlu0 %1300
    %v1302 = vcvt.f32.s32 %v1301
    %v1303 = vcvt.f32.s32 %v1297
    %v1304 = vshll.u32 %v1303, 16
    %v1305 = vadd.s32 %v1304, %v1302
    %vm1306 = vcmp.eq.s32.totalorder %v665, %v840
    %vm1307 = vcmp.eq.s32.totalorder %v665, %v855
    %vm1308 = vcmp.eq.s32.totalorder %v665, %v870
    %vm1309 = vcmp.eq.s32.totalorder %v665, %v885
    %vm1310 = vcmp.eq.s32.totalorder %v665, %v900
    %vm1311 = vcmp.eq.s32.totalorder %v665, %v915
    %vm1312 = vcmp.eq.s32.totalorder %v665, %v930
    %vm1313 = vcmp.eq.s32.totalorder %v665, %v945
    %vm1314 = vcmp.eq.s32.totalorder %v665, %v960
    %vm1315 = vcmp.eq.s32.totalorder %v665, %v975
    %vm1316 = vcmp.eq.s32.totalorder %v665, %v990
    %vm1317 = vcmp.eq.s32.totalorder %v665, %v1005
    %vm1318 = vcmp.eq.s32.totalorder %v665, %v1020
    %vm1319 = vcmp.eq.s32.totalorder %v665, %v1035
    %vm1320 = vcmp.eq.s32.totalorder %v665, %v1050
    %vm1321 = vcmp.eq.s32.totalorder %v665, %v1065
    %vm1322 = vcmp.eq.s32.totalorder %v665, %v1080
    %vm1323 = vcmp.eq.s32.totalorder %v665, %v1095
    %vm1324 = vcmp.eq.s32.totalorder %v665, %v1110
    %vm1325 = vcmp.eq.s32.totalorder %v665, %v1125
    %vm1326 = vcmp.eq.s32.totalorder %v665, %v1140
    %vm1327 = vcmp.eq.s32.totalorder %v665, %v1155
    %vm1328 = vcmp.eq.s32.totalorder %v665, %v1170
    %vm1329 = vcmp.eq.s32.totalorder %v665, %v1185
    %vm1330 = vcmp.eq.s32.totalorder %v665, %v1200
    %vm1331 = vcmp.eq.s32.totalorder %v665, %v1215
    %vm1332 = vcmp.eq.s32.totalorder %v665, %v1230
    %vm1333 = vcmp.eq.s32.totalorder %v665, %v1245
    %vm1334 = vcmp.eq.s32.totalorder %v665, %v1260
    %vm1335 = vcmp.eq.s32.totalorder %v665, %v1275
    %vm1336 = vcmp.eq.s32.totalorder %v665, %v1290
    %vm1337 = vcmp.eq.s32.totalorder %v665, %v1305
    %v1338 = vsel %vm1306, %v632, 0.0
    %v1339 = vsel %vm1307, %v633, 0.0
    %v1340 = vsel %vm1308, %v634, 0.0
    %v1341 = vsel %vm1309, %v635, 0.0
    %v1342 = vsel %vm1310, %v636, 0.0
    %v1343 = vsel %vm1311, %v637, 0.0
    %v1344 = vsel %vm1312, %v638, 0.0
    %v1345 = vsel %vm1313, %v639, 0.0
    %v1346 = vsel %vm1314, %v640, 0.0
    %v1347 = vsel %vm1315, %v641, 0.0
    %v1348 = vsel %vm1316, %v642, 0.0
    %v1349 = vsel %vm1317, %v643, 0.0
    %v1350 = vsel %vm1318, %v644, 0.0
    %v1351 = vsel %vm1319, %v645, 0.0
    %v1352 = vsel %vm1320, %v646, 0.0
    %v1353 = vsel %vm1321, %v647, 0.0
    %v1354 = vsel %vm1322, %v648, 0.0
    %v1355 = vsel %vm1323, %v649, 0.0
    %v1356 = vsel %vm1324, %v650, 0.0
    %v1357 = vsel %vm1325, %v651, 0.0
    %v1358 = vsel %vm1326, %v652, 0.0
    %v1359 = vsel %vm1327, %v653, 0.0
    %v1360 = vsel %vm1328, %v654, 0.0
    %v1361 = vsel %vm1329, %v655, 0.0
    %v1362 = vsel %vm1330, %v656, 0.0
    %v1363 = vsel %vm1331, %v657, 0.0
    %v1364 = vsel %vm1332, %v658, 0.0
    %v1365 = vsel %vm1333, %v659, 0.0
    %v1366 = vsel %vm1334, %v660, 0.0
    %v1367 = vsel %vm1335, %v661, 0.0
    %v1368 = vsel %vm1336, %v662, 0.0
    %v1369 = vsel %vm1337, %v663, 0.0
    %1370 = vst.msk [vmem:[%s3] sm:$0xff] %vm311, %v1338
    %1371 = vst.msk [vmem:[%s3 + $0x8] sm:$0xff] %vm311, %v1339
    %1372 = vst.msk [vmem:[%s3 + $0x10] sm:$0xff] %vm311, %v1340
    %1373 = vst.msk [vmem:[%s3 + $0x18] sm:$0xff] %vm311, %v1341
    %1374 = vst.msk [vmem:[%s3 + $0x20] sm:$0xff] %vm311, %v1342
    %1375 = vst.msk [vmem:[%s3 + $0x28] sm:$0xff] %vm311, %v1343
    %1376 = vst.msk [vmem:[%s3 + $0x30] sm:$0xff] %vm311, %v1344
    %1377 = vst.msk [vmem:[%s3 + $0x38] sm:$0xff] %vm311, %v1345
    %1378 = vst.msk [vmem:[%s3 + $0x40] sm:$0xff] %vm311, %v1346
    %1379 = vst.msk [vmem:[%s3 + $0x48] sm:$0xff] %vm311, %v1347
    %1380 = vst.msk [vmem:[%s3 + $0x50] sm:$0xff] %vm311, %v1348
    %1381 = vst.msk [vmem:[%s3 + $0x58] sm:$0xff] %vm311, %v1349
    %1382 = vst.msk [vmem:[%s3 + $0x60] sm:$0xff] %vm311, %v1350
    %1383 = vst.msk [vmem:[%s3 + $0x68] sm:$0xff] %vm311, %v1351
    %1384 = vst.msk [vmem:[%s3 + $0x70] sm:$0xff] %vm311, %v1352
    %1385 = vst.msk [vmem:[%s3 + $0x78] sm:$0xff] %vm311, %v1353
    %1386 = vst.msk [vmem:[%s3 + $0x80] sm:$0xff] %vm311, %v1354
    %1387 = vst.msk [vmem:[%s3 + $0x88] sm:$0xff] %vm311, %v1355
    %1388 = vst.msk [vmem:[%s3 + $0x90] sm:$0xff] %vm311, %v1356
    %1389 = vst.msk [vmem:[%s3 + $0x98] sm:$0xff] %vm311, %v1357
    %1390 = vst.msk [vmem:[%s3 + $0xa0] sm:$0xff] %vm311, %v1358
    %1391 = vst.msk [vmem:[%s3 + $0xa8] sm:$0xff] %vm311, %v1359
    %1392 = vst.msk [vmem:[%s3 + $0xb0] sm:$0xff] %vm311, %v1360
    %1393 = vst.msk [vmem:[%s3 + $0xb8] sm:$0xff] %vm311, %v1361
    %1394 = vst.msk [vmem:[%s3 + $0xc0] sm:$0xff] %vm311, %v1362
    %1395 = vst.msk [vmem:[%s3 + $0xc8] sm:$0xff] %vm311, %v1363
    %1396 = vst.msk [vmem:[%s3 + $0xd0] sm:$0xff] %vm311, %v1364
    %1397 = vst.msk [vmem:[%s3 + $0xd8] sm:$0xff] %vm311, %v1365
    %1398 = vst.msk [vmem:[%s3 + $0xe0] sm:$0xff] %vm311, %v1366
    %1399 = vst.msk [vmem:[%s3 + $0xe8] sm:$0xff] %vm311, %v1367
    %1400 = vst.msk [vmem:[%s3 + $0xf0] sm:$0xff] %vm311, %v1368
    %1401 = vst.msk [vmem:[%s3 + $0xf8] sm:$0xff] %vm311, %v1369
    %p1402 = scmp.eq.s32.totalorder 0, 0
    // Predicated region
    $region18: #{tpu_custom_call.1} parent=1 // pred_check
      %p1403 = pneg %p1402
    $region19: #{tpu_custom_call.1} parent=1 // pred_check_branch
      %1405 = sbr.rel (%p1403) target = $region21
    $region20: #{tpu_custom_call.1} parent=1 // pred_region
      %vm1406 = vcmask 24576
      %1407 = vst.msk [vmem:[#allocation5] sm:$0x1] %vm1406, 0.0
    $region21: #{tpu_custom_call.1} parent=1 // pred_fallthru
      _
    %v1408 = vld [vmem:[#allocation5] sm:$0x1]
    %v1409 = vsel %vm311, %v1338, 0.0
    %v1410 = vsel %vm311, %v1339, 0.0
    %v1411 = vadd.f32 %v1409, %v1410
    %v1412 = vsel %vm311, %v1340, 0.0
    %v1413 = vadd.f32 %v1411, %v1412
    %v1414 = vsel %vm311, %v1341, 0.0
    %v1415 = vadd.f32 %v1413, %v1414
    %v1416 = vsel %vm311, %v1342, 0.0
    %v1417 = vadd.f32 %v1415, %v1416
    %v1418 = vsel %vm311, %v1343, 0.0
    %v1419 = vadd.f32 %v1417, %v1418
    %v1420 = vsel %vm311, %v1344, 0.0
    %v1421 = vadd.f32 %v1419, %v1420
    %v1422 = vsel %vm311, %v1345, 0.0
    %v1423 = vadd.f32 %v1421, %v1422
    %v1424 = vsel %vm311, %v1346, 0.0
    %v1425 = vadd.f32 %v1423, %v1424
    %v1426 = vsel %vm311, %v1347, 0.0
    %v1427 = vadd.f32 %v1425, %v1426
    %v1428 = vsel %vm311, %v1348, 0.0
    %v1429 = vadd.f32 %v1427, %v1428
    %v1430 = vsel %vm311, %v1349, 0.0
    %v1431 = vadd.f32 %v1429, %v1430
    %v1432 = vsel %vm311, %v1350, 0.0
    %v1433 = vadd.f32 %v1431, %v1432
    %v1434 = vsel %vm311, %v1351, 0.0
    %v1435 = vadd.f32 %v1433, %v1434
    %v1436 = vsel %vm311, %v1352, 0.0
    %v1437 = vadd.f32 %v1435, %v1436
    %v1438 = vsel %vm311, %v1353, 0.0
    %v1439 = vadd.f32 %v1437, %v1438
    %v1440 = vsel %vm311, %v1354, 0.0
    %v1441 = vadd.f32 %v1439, %v1440
    %v1442 = vsel %vm311, %v1355, 0.0
    %v1443 = vadd.f32 %v1441, %v1442
    %v1444 = vsel %vm311, %v1356, 0.0
    %v1445 = vadd.f32 %v1443, %v1444
    %v1446 = vsel %vm311, %v1357, 0.0
    %v1447 = vadd.f32 %v1445, %v1446
    %v1448 = vsel %vm311, %v1358, 0.0
    %v1449 = vadd.f32 %v1447, %v1448
    %v1450 = vsel %vm311, %v1359, 0.0
    %v1451 = vadd.f32 %v1449, %v1450
    %v1452 = vsel %vm311, %v1360, 0.0
    %v1453 = vadd.f32 %v1451, %v1452
    %v1454 = vsel %vm311, %v1361, 0.0
    %v1455 = vadd.f32 %v1453, %v1454
    %v1456 = vsel %vm311, %v1362, 0.0
    %v1457 = vadd.f32 %v1455, %v1456
    %v1458 = vsel %vm311, %v1363, 0.0
    %v1459 = vadd.f32 %v1457, %v1458
    %v1460 = vsel %vm311, %v1364, 0.0
    %v1461 = vadd.f32 %v1459, %v1460
    %v1462 = vsel %vm311, %v1365, 0.0
    %v1463 = vadd.f32 %v1461, %v1462
    %v1464 = vsel %vm311, %v1366, 0.0
    %v1465 = vadd.f32 %v1463, %v1464
    %v1466 = vsel %vm311, %v1367, 0.0
    %v1467 = vadd.f32 %v1465, %v1466
    %v1468 = vsel %vm311, %v1368, 0.0
    %v1469 = vadd.f32 %v1467, %v1468
    %v1470 = vsel %vm311, %v1369, 0.0
    %v1471 = vadd.f32 %v1469, %v1470
    %v1472 = vrot.slane %v1471, 4
    %v1473 = vadd.f32 %v1471, %v1472
    %v1474 = vrot.slane %v1473, 2
    %v1475 = vadd.f32 %v1473, %v1474
    %v1476 = vrot.slane %v1475, 1
    %v1477 = vadd.f32 %v1475, %v1476
    %v1478 = vadd.f32 %v1408, %v1477
    %vm1479 = vcmask 24576
    %1480 = vst.msk [vmem:[#allocation5] sm:$0x1] %vm1479, %v1478
    // Predicated region
    $region22: #{tpu_custom_call.1} parent=1 // pred_check
      _
    $region23: #{tpu_custom_call.1} parent=1 // pred_check_branch
      %1482 = sbr.rel (0) target = $region25
    $region24: #{tpu_custom_call.1} parent=1 // pred_region
      _
    $region25: #{tpu_custom_call.1} parent=1 // pred_fallthru
      _
    // Predicated region
    $region26: #{tpu_custom_call.1} parent=1 // pred_check
      _
    $region27: #{tpu_custom_call.1} parent=1 // pred_check_branch
      %1484 = sbr.rel (0) target = $region29
    $region28: #{tpu_custom_call.1} parent=1 // pred_region
      %s1486 = ssub.s32 16, 16
      %1487 = vsyncadd [#allocation4], %s1486
      %s1489 = sshll.u32 [#allocation5], 4
      %s1490 = int_to_ptr.vmem [resolvable:$true] %s1489
      %1492 = dma.vmem_to_hbm [thread:$0]  %s1490, 16, %s4, [#allocation4]
    $region29: #{tpu_custom_call.1} parent=1 // pred_fallthru
      _
    // Predicated region
    $region30: #{tpu_custom_call.1} parent=1 // pred_check
      _
    $region31: #{tpu_custom_call.1} parent=1 // pred_check_branch
      %1494 = sbr.rel (0) target = $region33
    $region32: #{tpu_custom_call.1} parent=1 // pred_region
      _
    $region33: #{tpu_custom_call.1} parent=1 // pred_fallthru
      _
    // Predicated region
    $region34: #{tpu_custom_call.1} parent=1 // pred_check
      _
    $region35: #{tpu_custom_call.1} parent=1 // pred_check_branch
      %1496 = sbr.rel (0) target = $region37
    $region36: #{tpu_custom_call.1} parent=1 // pred_region
      %1497 = dma.done [#allocation4], 16
    $region37: #{tpu_custom_call.1} parent=1 // pred_fallthru
      _
    %1498 = vsyncpa [#allocation3], 1
    %1499 = vsyncpa [#allocation4], 1

</llo_original>
